<compile_context>
chip_gen: v7x
topology: tpu7x:2x2x1
jax: 0.10.0
libtpu: 0.0.40
codegen_flags: <defaults>
</compile_context>

<pallas_src>
import functools
import math

import numpy as np
import jax
import jax.numpy as jnp
from jax import lax
from jax.experimental import pallas as pl
from jax.experimental.pallas import tpu as pltpu


_VMEM_LIMIT = 64 * 1024 * 1024   # safe on v5e/v6e (128 MiB) and v7x (64 MiB)


# ----------------------------- Pallas matmul ---------------------------------
def _matmul_kernel(a_ref, b_ref, o_ref, acc_ref):
    # f32 VMEM accumulator; bf16 output written only on the last k step.
    @pl.when(pl.program_id(2) == 0)
    def _():
        acc_ref[...] = jnp.zeros_like(acc_ref)

    acc_ref[...] += jnp.dot(a_ref[...], b_ref[...],
                            preferred_element_type=jnp.float32)

    @pl.when(pl.program_id(2) == pl.num_programs(2) - 1)
    def _():
        o_ref[...] = acc_ref[...].astype(o_ref.dtype)


_MM_CACHE = {}


def _get_matmul(Mp, Kp, Np, tm, tk, tn):
    key = (Mp, Kp, Np, tm, tk, tn)
    if key not in _MM_CACHE:
        cost = pl.CostEstimate(
            flops=2 * Mp * Kp * Np,
            transcendentals=0,
            bytes_accessed=2 * (Mp * Kp + Kp * Np + Mp * Np))
        _MM_CACHE[key] = pl.pallas_call(
            _matmul_kernel,
            out_shape=jax.ShapeDtypeStruct((Mp, Np), jnp.bfloat16),
            grid_spec=pltpu.PrefetchScalarGridSpec(
                num_scalar_prefetch=0,
                grid=(Mp // tm, Np // tn, Kp // tk),
                in_specs=[pl.BlockSpec((tm, tk), lambda i, j, k: (i, k)),
                          pl.BlockSpec((tk, tn), lambda i, j, k: (k, j))],
                out_specs=pl.BlockSpec((tm, tn), lambda i, j, k: (i, j)),
                scratch_shapes=[pltpu.VMEM((tm, tn), jnp.float32)]),
            compiler_params=pltpu.CompilerParams(
                dimension_semantics=("parallel", "parallel", "arbitrary"),
                vmem_limit_bytes=_VMEM_LIMIT),
            cost_estimate=cost,
        )
    return _MM_CACHE[key]


def _ru(x, m):
    return (x + m - 1) // m * m


def _tile(dim, full_cap, choices, fallback):
    """Pick (tile, padded_dim). Full-dim block when small, else a dividing tile."""
    if dim <= full_cap:
        return dim, dim
    for c in choices:
        if dim % c == 0:
            return c, dim
    return fallback, _ru(dim, fallback)


def pallas_matmul(a, b):
    """(M,K) @ (K,N) -> (M,N) bf16; bf16 MXU operands, f32 VMEM accumulation."""
    M, K = a.shape
    K2, N = b.shape
    assert K == K2
    tm, Mp = _tile(M, 512, (512, 256, 128), 128)
    tk, Kp = _tile(K, 2048, (512, 256, 128), 128)
    tn, Np = _tile(N, 512, (512, 256, 128), 128)
    # v7x megacore: if M is a single block, split N so both TensorCores get work.
    if Mp // tm == 1 and Np // tn == 1 and Np % 256 == 0:
        tn = Np // 2
    a = a.astype(jnp.bfloat16)
    b = b.astype(jnp.bfloat16)
    if (Mp, Kp) != (M, K):
        a = jnp.pad(a, ((0, Mp - M), (0, Kp - K)))
    if (Kp, Np) != (K, N):
        b = jnp.pad(b, ((0, Kp - K), (0, Np - N)))
    out = _get_matmul(Mp, Kp, Np, tm, tk, tn)(a, b)
    if (Mp, Np) != (M, N):
        out = out[:M, :N]
    return out


# --------------------------- Pallas GroupNorm --------------------------------
def _gn_kernel(x_ref, g_ref, b_ref, cg_ref, gc_ref, *rest,
               has_res, relu, eps, inv_cnt):
    if has_res:
        res_ref, o_ref = rest
    else:
        (o_ref,) = rest
    x = x_ref[0].astype(jnp.float32)                       # (HW, C)
    # per-channel sums -> group means (one-hot (C,G)) -> broadcast back (G,C)
    ch_sum = jnp.sum(x, axis=0, keepdims=True)             # (1, C)
    mean_c = jnp.dot(
        jnp.dot(ch_sum, cg_ref[...], preferred_element_type=jnp.float32) * inv_cnt,
        gc_ref[...], preferred_element_type=jnp.float32)   # (1, C)
    xc = x - mean_c
    var_c = jnp.dot(
        jnp.dot(jnp.sum(xc * xc, axis=0, keepdims=True), cg_ref[...],
                preferred_element_type=jnp.float32) * inv_cnt,
        gc_ref[...], preferred_element_type=jnp.float32)   # (1, C)
    y = xc * lax.rsqrt(var_c + eps)
    y = y * g_ref[...] + b_ref[...]                        # per-channel affine
    if has_res:
        y = y + res_ref[0].astype(jnp.float32)
    if relu:
        y = jnp.maximum(y, 0.0)
    o_ref[0] = y.astype(o_ref.dtype)


_GN_CACHE = {}
_GMAT_CACHE = {}


def _group_mats(C, G, fold):
    """Channel->group one-hot mats. NUMPY ONLY in the cache (no tracer leaks)."""
    key = (C, G, fold)
    if key not in _GMAT_CACHE:
        onehot = np.zeros((C, G), np.float32)
        onehot[np.arange(C), np.arange(C) // (C // G)] = 1.0
        onehot = np.tile(onehot, (fold, 1))                # (C*fold, G)
        _GMAT_CACHE[key] = (onehot, np.ascontiguousarray(onehot.T))
    return _GMAT_CACHE[key]


def _get_gn(N, HW, C, G, has_res, relu, x_dtype, res_dtype):
    key = (N, HW, C, G, has_res, relu, str(x_dtype), str(res_dtype))
    if key not in _GN_CACHE:
        kern = functools.partial(_gn_kernel, has_res=has_res, relu=relu,
                                 eps=1e-5, inv_cnt=1.0 / (HW * (C // G)))
        in_specs = [pl.BlockSpec((1, HW, C), lambda n: (n, 0, 0)),   # x
                    pl.BlockSpec((1, C), lambda n: (0, 0)),          # gamma
                    pl.BlockSpec((1, C), lambda n: (0, 0)),          # beta
                    pl.BlockSpec((C, G), lambda n: (0, 0)),          # channel->group
                    pl.BlockSpec((G, C), lambda n: (0, 0))]          # group->channel
        if has_res:
            in_specs.append(pl.BlockSpec((1, HW, C), lambda n: (n, 0, 0)))
        _GN_CACHE[key] = pl.pallas_call(
            kern,
            out_shape=jax.ShapeDtypeStruct((N, HW, C), jnp.bfloat16),
            grid_spec=pltpu.PrefetchScalarGridSpec(
                num_scalar_prefetch=0,
                grid=(N,),
                in_specs=in_specs,
                out_specs=pl.BlockSpec((1, HW, C), lambda n: (n, 0, 0))),
            compiler_params=pltpu.CompilerParams(
                dimension_semantics=("parallel",),
                vmem_limit_bytes=_VMEM_LIMIT),
        )
    return _GN_CACHE[key]


def group_norm(x, gamma, beta, residual=None, relu=False, groups=32):
    """GroupNorm(min(32,C), C) on NHWC x, fused affine + residual + ReLU."""
    N, H, W, C = x.shape
    G = min(groups, C)
    HW = H * W
    # Lane-dense trick for narrow channel counts (stem C=64): fold spatial
    # positions into the channel axis so stores are 128-lane dense. Group
    # statistics are unchanged (same element set per (sample, group)).
    fold = 1
    if C < 128 and 128 % C == 0 and HW % (128 // C) == 0:
        fold = 128 // C
    HWf, Cf = HW // fold, C * fold
    cg_np, gc_np = _group_mats(C, G, fold)
    gamma_f = jnp.tile(gamma, (1, fold)) if fold > 1 else gamma
    beta_f = jnp.tile(beta, (1, fold)) if fold > 1 else beta
    args = [x.reshape(N, HWf, Cf), gamma_f, beta_f,
            jnp.asarray(cg_np), jnp.asarray(gc_np)]
    res_dtype = None
    if residual is not None:
        args.append(residual.reshape(N, HWf, Cf))
        res_dtype = residual.dtype
    fn = _get_gn(N, HWf, Cf, G, residual is not None, relu, x.dtype, res_dtype)
    return fn(*args).reshape(N, H, W, C)


# ------------------------------ conv / pool glue ------------------------------
def conv2d(x, w_mat, kh, kw, stride, padding):
    """PyTorch-semantics conv (cross-correlation, no bias) on NHWC activations.

    x: (N, H, W, Cin); w_mat: (kh*kw*Cin, Cout) pre-laid-out bf16 (row order
    dy, dx, ci == PyTorch weight.transpose(2,3,1,0).reshape(-1, Cout)).
    """
    N, H, W, Cin = x.shape
    Ho = (H + 2 * padding - kh) // stride + 1
    Wo = (W + 2 * padding - kw) // stride + 1
    if kh == 1 and kw == 1 and padding == 0:
        xs = x[:, ::stride, ::stride, :] if stride > 1 else x
        a = xs.reshape(N * Ho * Wo, Cin)
    else:
        # TODO(synk): im2col materialized by XLA (fused under jit); a tap-fused
        # Pallas conv (tap grid axis / manual DMA halo blocks) would avoid it.
        xp = jnp.pad(x, ((0, 0), (padding, padding), (padding, padding), (0, 0)))
        taps = []
        for dy in range(kh):
            for dx in range(kw):
                taps.append(xp[:, dy:dy + stride * (Ho - 1) + 1:stride,
                                  dx:dx + stride * (Wo - 1) + 1:stride, :])
        patches = jnp.stack(taps, axis=3)            # (N, Ho, Wo, kh*kw, Cin)
        a = patches.reshape(N * Ho * Wo, kh * kw * Cin)
    y = pallas_matmul(a, w_mat)                      # (N*Ho*Wo, Cout) bf16
    return y.reshape(N, Ho, Wo, -1)


def maxpool_3x3_s2_p1(x):
    # TODO(synk): window max kept as plain-JAX slicing glue (fused under jit).
    N, H, W, C = x.shape
    xp = jnp.pad(x, ((0, 0), (1, 1), (1, 1), (0, 0)), constant_values=-jnp.inf)
    Ho = (H + 2 - 3) // 2 + 1
    Wo = (W + 2 - 3) // 2 + 1
    out = None
    for dy in range(3):
        for dx in range(3):
            v = xp[:, dy:dy + 2 * (Ho - 1) + 1:2, dx:dx + 2 * (Wo - 1) + 1:2, :]
            out = v if out is None else jnp.maximum(out, v)
    return out


# --------------------------- wide_resnet50_2 model ----------------------------
def init_wide_resnet50_2(key):
    keys = iter(jax.random.split(key, 128))

    def convw(cout, cin, kh, kw):
        fan_in = cin * kh * kw
        w = jax.random.normal(next(keys), (kh * kw * cin, cout), jnp.float32)
        return (w * math.sqrt(2.0 / fan_in)).astype(jnp.bfloat16)

    def gnp(c):
        return jnp.ones((1, c), jnp.float32), jnp.zeros((1, c), jnp.float32)

    params = {'conv1_w': convw(64, 3, 7, 7)}
    params['gn1_g'], params['gn1_b'] = gnp(64)
    # (num_blocks, inplanes, planes); width_per_group=128 -> width = planes*2
    cfg = [(3, 64, 64), (4, 256, 128), (6, 512, 256), (3, 1024, 512)]
    layers = []
    for nblocks, inplanes, planes in cfg:
        width, outp = planes * 2, planes * 4
        blocks = []
        for b in range(nblocks):
            cin = inplanes if b == 0 else outp
            blk = {'conv1_w': convw(width, cin, 1, 1),
                   'conv2_w': convw(width, width, 3, 3),
                   'conv3_w': convw(outp, width, 1, 1)}
            blk['gn1_g'], blk['gn1_b'] = gnp(width)
            blk['gn2_g'], blk['gn2_b'] = gnp(width)
            blk['gn3_g'], blk['gn3_b'] = gnp(outp)
            if b == 0:
                blk['ds_w'] = convw(outp, cin, 1, 1)
                blk['ds_g'], blk['ds_b'] = gnp(outp)
            blocks.append(blk)
        layers.append(blocks)
    params['layers'] = layers
    # fc: (2048 -> 1000); stored pre-transposed (K, N) and N-padded to 1024, bf16
    fc = jax.random.normal(next(keys), (2048, 1000), jnp.float32) / math.sqrt(2048)
    params['fc_w'] = jnp.pad(fc, ((0, 0), (0, 24))).astype(jnp.bfloat16)
    params['fc_b'] = jnp.zeros((1000,), jnp.float32)
    return params


@jax.jit
def _stem(x_nchw, conv1_w, gn1_g, gn1_b):
    x = x_nchw.transpose(0, 2, 3, 1).astype(jnp.bfloat16)   # NCHW -> NHWC, once
    x = conv2d(x, conv1_w, 7, 7, 2, 3)
    x = group_norm(x, gn1_g, gn1_b, relu=True)
    return maxpool_3x3_s2_p1(x)


@functools.partial(jax.jit, static_argnums=(2,))
def _bottleneck(x, blk, stride):
    identity = x
    out = conv2d(x, blk['conv1_w'], 1, 1, 1, 0)
    out = group_norm(out, blk['gn1_g'], blk['gn1_b'], relu=True)
    out = conv2d(out, blk['conv2_w'], 3, 3, stride, 1)
    out = group_norm(out, blk['gn2_g'], blk['gn2_b'], relu=True)
    out = conv2d(out, blk['conv3_w'], 1, 1, 1, 0)
    if 'ds_w' in blk:
        identity = conv2d(x, blk['ds_w'], 1, 1, stride, 0)
        identity = group_norm(identity, blk['ds_g'], blk['ds_b'], relu=False)
    return group_norm(out, blk['gn3_g'], blk['gn3_b'], residual=identity, relu=True)


@jax.jit
def _head(x, fc_w, fc_b):
    feat = jnp.mean(x.astype(jnp.float32), axis=(1, 2))     # adaptive avgpool
    logits = pallas_matmul(feat, fc_w)[:, :fc_b.shape[0]].astype(jnp.float32)
    return logits + fc_b[None, :]


_LAYER_STRIDES = (1, 2, 2, 2)


def wide_resnet50_forward(params, x, training=False):
    # eval-mode forward (after BN->GN replacement, the training flag is a no-op)
    x = _stem(x, params['conv1_w'], params['gn1_g'], params['gn1_b'])
    for li, blocks in enumerate(params['layers']):
        for bi, blk in enumerate(blocks):
            x = _bottleneck(x, blk, _LAYER_STRIDES[li] if bi == 0 else 1)
    return _head(x, params['fc_w'], params['fc_b'])          # (N, 1000)


if __name__ == "__main__":
    key = jax.random.PRNGKey(0)
    pkey, xkey = jax.random.split(key)
    params = init_wide_resnet50_2(pkey)
    x = jax.random.normal(xkey, (2, 3, 32, 32), jnp.float32)   # NCHW input
    logits = jax.block_until_ready(wide_resnet50_forward(params, x))
    assert logits.shape == (2, 1000)
    assert bool(jnp.all(jnp.isfinite(logits)))
    print("KERNEL_OK")
</pallas_src>

<mosaic_0001>
module attributes {stable_mosaic.version = 11 : i64} {
  func.func @_matmul_kernel(%arg0: i32, %arg1: i32, %arg2: i32, %arg3: memref<512x147xbf16, #tpu.memory_space<vmem>>, %arg4: memref<147x64xbf16, #tpu.memory_space<vmem>>, %arg5: memref<512x64xbf16, #tpu.memory_space<vmem>>, %arg6: memref<512x64xf32, #tpu.memory_space<vmem>>) attributes {dimension_semantics = [#tpu.dimension_semantics<parallel>, #tpu.dimension_semantics<parallel>, #tpu.dimension_semantics<arbitrary>], iteration_bounds = array<i64: 1, 1, 1>, scalar_prefetch = 0 : i64, scratch_operands = 1 : i64, tpu.core_type = #tpu.core_type<tc>, window_params = [{transform_indices = @transform_0, window_bounds = array<i64: 512, 147>}, {transform_indices = @transform_1, window_bounds = array<i64: 147, 64>}, {transform_indices = @transform_2, window_bounds = array<i64: 512, 64>}]} {
    %c0_i32 = arith.constant 0 : i32
    %0 = arith.cmpi eq, %arg2, %c0_i32 : i32
    %1 = arith.extui %0 : i1 to i32
    %c0_i32_0 = arith.constant 0 : i32
    %2 = arith.cmpi ne, %1, %c0_i32_0 : i32
    scf.if %2 {
      %cst_10 = arith.constant 0.000000e+00 : f32
      %12 = vector.broadcast %cst_10 : f32 to vector<512x64xf32>
      %c0_11 = arith.constant 0 : index
      %c0_12 = arith.constant 0 : index
      %13 = vector.load %arg6[%c0_11, %c0_12] : memref<512x64xf32, #tpu.memory_space<vmem>>, vector<512x64xf32>
      tpu.vector_store %arg6[%c0_11, %c0_12], %12 {strides = array<i32>} : memref<512x64xf32, #tpu.memory_space<vmem>>, vector<512x64xf32>,
    } else {
    }
    %c0 = arith.constant 0 : index
    %c0_1 = arith.constant 0 : index
    %3 = vector.load %arg6[%c0, %c0_1] : memref<512x64xf32, #tpu.memory_space<vmem>>, vector<512x64xf32>
    %c0_2 = arith.constant 0 : index
    %c0_3 = arith.constant 0 : index
    %4 = vector.load %arg3[%c0_2, %c0_3] : memref<512x147xbf16, #tpu.memory_space<vmem>>, vector<512x147xbf16>
    %c0_4 = arith.constant 0 : index
    %c0_5 = arith.constant 0 : index
    %5 = vector.load %arg4[%c0_4, %c0_5] : memref<147x64xbf16, #tpu.memory_space<vmem>>, vector<147x64xbf16>
    %cst = arith.constant dense<0.000000e+00> : vector<512x64xf32>
    %6 = tpu.matmul %4, %5, %cst {dimension_numbers = #tpu.dot_dimension_numbers<[1], [0], [0], [1], [0, 0, 1, 1], [], []>} : vector<512x147xbf16>, vector<147x64xbf16>, vector<512x64xf32> -> vector<512x64xf32>
    %7 = arith.addf %3, %6 : vector<512x64xf32>
    %c0_6 = arith.constant 0 : index
    %c0_7 = arith.constant 0 : index
    %8 = vector.load %arg6[%c0_6, %c0_7] : memref<512x64xf32, #tpu.memory_space<vmem>>, vector<512x64xf32>
    tpu.vector_store %arg6[%c0_6, %c0_7], %7 {strides = array<i32>} : memref<512x64xf32, #tpu.memory_space<vmem>>, vector<512x64xf32>,
    %c0_i32_8 = arith.constant 0 : i32
    %9 = arith.cmpi eq, %arg2, %c0_i32_8 : i32
    %10 = arith.extui %9 : i1 to i32
    %c0_i32_9 = arith.constant 0 : i32
    %11 = arith.cmpi ne, %10, %c0_i32_9 : i32
    scf.if %11 {
      %c0_10 = arith.constant 0 : index
      %c0_11 = arith.constant 0 : index
      %12 = vector.load %arg6[%c0_10, %c0_11] : memref<512x64xf32, #tpu.memory_space<vmem>>, vector<512x64xf32>
      %13 = arith.truncf %12 : vector<512x64xf32> to vector<512x64xbf16>
      %c0_12 = arith.constant 0 : index
      %c0_13 = arith.constant 0 : index
      %14 = vector.load %arg5[%c0_12, %c0_13] : memref<512x64xbf16, #tpu.memory_space<vmem>>, vector<512x64xbf16>
      tpu.vector_store %arg5[%c0_12, %c0_13], %13 {strides = array<i32>} : memref<512x64xbf16, #tpu.memory_space<vmem>>, vector<512x64xbf16>,
    } else {
    }
    return
  }
  func.func @transform_0(%arg0: i32, %arg1: i32, %arg2: i32) -> (i32, i32) {
    %c0_i32 = arith.constant 0 : i32
    return %arg0, %arg2 : i32, i32
  }
  func.func @transform_1(%arg0: i32, %arg1: i32, %arg2: i32) -> (i32, i32) {
    %c0_i32 = arith.constant 0 : i32
    return %arg2, %arg1 : i32, i32
  }
  func.func @transform_2(%arg0: i32, %arg1: i32, %arg2: i32) -> (i32, i32) {
    %c0_i32 = arith.constant 0 : i32
    return %arg0, %arg1 : i32, i32
  }
}

module attributes {stable_mosaic.version = 11 : i64} {
  func.func @_gn_kernel(%arg0: i32, %arg1: memref<1x128x128xbf16, #tpu.memory_space<vmem>>, %arg2: memref<1x128xf32, #tpu.memory_space<vmem>>, %arg3: memref<1x128xf32, #tpu.memory_space<vmem>>, %arg4: memref<128x32xf32, #tpu.memory_space<vmem>>, %arg5: memref<32x128xf32, #tpu.memory_space<vmem>>, %arg6: memref<1x128x128xbf16, #tpu.memory_space<vmem>>) attributes {dimension_semantics = [#tpu.dimension_semantics<parallel>], iteration_bounds = array<i64: 2>, scalar_prefetch = 0 : i64, scratch_operands = 0 : i64, tpu.core_type = #tpu.core_type<tc>, window_params = [{transform_indices = @transform_0, window_bounds = array<i64: 1, 128, 128>}, {pipeline_mode = #tpu.pipeline_mode<synchronous>, transform_indices = @transform_1, window_bounds = array<i64: 1, 128>}, {pipeline_mode = #tpu.pipeline_mode<synchronous>, transform_indices = @transform_2, window_bounds = array<i64: 1, 128>}, {pipeline_mode = #tpu.pipeline_mode<synchronous>, transform_indices = @transform_3, window_bounds = array<i64: 128, 32>}, {pipeline_mode = #tpu.pipeline_mode<synchronous>, transform_indices = @transform_4, window_bounds = array<i64: 32, 128>}, {transform_indices = @transform_5, window_bounds = array<i64: 1, 128, 128>}]} {
    %c0 = arith.constant 0 : index
    %c0_0 = arith.constant 0 : index
    %c0_1 = arith.constant 0 : index
    %0 = vector.load %arg1[%c0, %c0_0, %c0_1] : memref<1x128x128xbf16, #tpu.memory_space<vmem>>, vector<1x128x128xbf16>
    %1 = vector.shape_cast %0 : vector<1x128x128xbf16> to vector<128x128xbf16>
    %2 = arith.extf %1 : vector<128x128xbf16> to vector<128x128xf32>
    %cst = arith.constant dense<0.000000e+00> : vector<128xf32>
    %3 = vector.multi_reduction <add>, %2, %cst [0] : vector<128x128xf32> to vector<128xf32>
    %4 = vector.shape_cast %3 : vector<128xf32> to vector<1x128xf32>
    %c0_2 = arith.constant 0 : index
    %c0_3 = arith.constant 0 : index
    %5 = vector.load %arg4[%c0_2, %c0_3] : memref<128x32xf32, #tpu.memory_space<vmem>>, vector<128x32xf32>
    %cst_4 = arith.constant dense<0.000000e+00> : vector<1x32xf32>
    %6 = tpu.matmul %4, %5, %cst_4 {dimension_numbers = #tpu.dot_dimension_numbers<[1], [0], [0], [1], [0, 0, 1, 1], [], []>} : vector<1x128xf32>, vector<128x32xf32>, vector<1x32xf32> -> vector<1x32xf32>
    %cst_5 = arith.constant 0.001953125 : f32
    %7 = vector.broadcast %cst_5 : f32 to vector<1x32xf32>
    %8 = arith.mulf %6, %7 : vector<1x32xf32>
    %c0_6 = arith.constant 0 : index
    %c0_7 = arith.constant 0 : index
    %9 = vector.load %arg5[%c0_6, %c0_7] : memref<32x128xf32, #tpu.memory_space<vmem>>, vector<32x128xf32>
    %cst_8 = arith.constant dense<0.000000e+00> : vector<1x128xf32>
    %10 = tpu.matmul %8, %9, %cst_8 {dimension_numbers = #tpu.dot_dimension_numbers<[1], [0], [0], [1], [0, 0, 1, 1], [], []>} : vector<1x32xf32>, vector<32x128xf32>, vector<1x128xf32> -> vector<1x128xf32>
    %11 = vector.broadcast %10 : vector<1x128xf32> to vector<128x128xf32>
    %12 = arith.subf %2, %11 : vector<128x128xf32>
    %13 = arith.mulf %12, %12 : vector<128x128xf32>
    %cst_9 = arith.constant dense<0.000000e+00> : vector<128xf32>
    %14 = vector.multi_reduction <add>, %13, %cst_9 [0] : vector<128x128xf32> to vector<128xf32>
    %15 = vector.shape_cast %14 : vector<128xf32> to vector<1x128xf32>
    %c0_10 = arith.constant 0 : index
    %c0_11 = arith.constant 0 : index
    %16 = vector.load %arg4[%c0_10, %c0_11] : memref<128x32xf32, #tpu.memory_space<vmem>>, vector<128x32xf32>
    %cst_12 = arith.constant dense<0.000000e+00> : vector<1x32xf32>
    %17 = tpu.matmul %15, %16, %cst_12 {dimension_numbers = #tpu.dot_dimension_numbers<[1], [0], [0], [1], [0, 0, 1, 1], [], []>} : vector<1x128xf32>, vector<128x32xf32>, vector<1x32xf32> -> vector<1x32xf32>
    %cst_13 = arith.constant 0.001953125 : f32
    %18 = vector.broadcast %cst_13 : f32 to vector<1x32xf32>
    %19 = arith.mulf %17, %18 : vector<1x32xf32>
    %c0_14 = arith.constant 0 : index
    %c0_15 = arith.constant 0 : index
    %20 = vector.load %arg5[%c0_14, %c0_15] : memref<32x128xf32, #tpu.memory_space<vmem>>, vector<32x128xf32>
    %cst_16 = arith.constant dense<0.000000e+00> : vector<1x128xf32>
    %21 = tpu.matmul %19, %20, %cst_16 {dimension_numbers = #tpu.dot_dimension_numbers<[1], [0], [0], [1], [0, 0, 1, 1], [], []>} : vector<1x32xf32>, vector<32x128xf32>, vector<1x128xf32> -> vector<1x128xf32>
    %cst_17 = arith.constant 9.99999974E-6 : f32
    %22 = vector.broadcast %cst_17 : f32 to vector<1x128xf32>
    %23 = arith.addf %21, %22 : vector<1x128xf32>
    %24 = math.rsqrt %23 : vector<1x128xf32>
    %25 = vector.broadcast %24 : vector<1x128xf32> to vector<128x128xf32>
    %26 = arith.mulf %12, %25 : vector<128x128xf32>
    %c0_18 = arith.constant 0 : index
    %c0_19 = arith.constant 0 : index
    %27 = vector.load %arg2[%c0_18, %c0_19] : memref<1x128xf32, #tpu.memory_space<vmem>>, vector<1x128xf32>
    %28 = vector.broadcast %27 : vector<1x128xf32> to vector<128x128xf32>
    %29 = arith.mulf %26, %28 : vector<128x128xf32>
    %c0_20 = arith.constant 0 : index
    %c0_21 = arith.constant 0 : index
    %30 = vector.load %arg3[%c0_20, %c0_21] : memref<1x128xf32, #tpu.memory_space<vmem>>, vector<1x128xf32>
    %31 = vector.broadcast %30 : vector<1x128xf32> to vector<128x128xf32>
    %32 = arith.addf %29, %31 : vector<128x128xf32>
    %cst_22 = arith.constant 0.000000e+00 : f32
    %33 = vector.broadcast %cst_22 : f32 to vector<128x128xf32>
    %34 = arith.maximumf %32, %33 : vector<128x128xf32>
    %35 = arith.truncf %34 : vector<128x128xf32> to vector<128x128xbf16>
    %c0_23 = arith.constant 0 : index
    %c0_24 = arith.constant 0 : index
    %c0_25 = arith.constant 0 : index
    %36 = vector.load %arg6[%c0_23, %c0_24, %c0_25] : memref<1x128x128xbf16, #tpu.memory_space<vmem>>, vector<1x128x128xbf16>
    %37 = vector.shape_cast %36 : vector<1x128x128xbf16> to vector<128x128xbf16>
    %38 = vector.shape_cast %35 : vector<128x128xbf16> to vector<1x128x128xbf16>
    tpu.vector_store %arg6[%c0_23, %c0_24, %c0_25], %38 {strides = array<i32>} : memref<1x128x128xbf16, #tpu.memory_space<vmem>>, vector<1x128x128xbf16>,
    return
  }
  func.func @transform_0(%arg0: i32) -> (i32, i32, i32) {
    %c0_i32 = arith.constant 0 : i32
    %c0_i32_0 = arith.constant 0 : i32
    %c0_i32_1 = arith.constant 0 : i32
    return %arg0, %c0_i32, %c0_i32_0 : i32, i32, i32
  }
  func.func @transform_1(%arg0: i32) -> (i32, i32) {
    %c0_i32 = arith.constant 0 : i32
    %c0_i32_0 = arith.constant 0 : i32
    %c0_i32_1 = arith.constant 0 : i32
    return %c0_i32, %c0_i32_0 : i32, i32
  }
  func.func @transform_2(%arg0: i32) -> (i32, i32) {
    %c0_i32 = arith.constant 0 : i32
    %c0_i32_0 = arith.constant 0 : i32
    %c0_i32_1 = arith.constant 0 : i32
    return %c0_i32, %c0_i32_0 : i32, i32
  }
  func.func @transform_3(%arg0: i32) -> (i32, i32) {
    %c0_i32 = arith.constant 0 : i32
    %c0_i32_0 = arith.constant 0 : i32
    %c0_i32_1 = arith.constant 0 : i32
    return %c0_i32, %c0_i32_0 : i32, i32
  }
  func.func @transform_4(%arg0: i32) -> (i32, i32) {
    %c0_i32 = arith.constant 0 : i32
    %c0_i32_0 = arith.constant 0 : i32
    %c0_i32_1 = arith.constant 0 : i32
    return %c0_i32, %c0_i32_0 : i32, i32
  }
  func.func @transform_5(%arg0: i32) -> (i32, i32, i32) {
    %c0_i32 = arith.constant 0 : i32
    %c0_i32_0 = arith.constant 0 : i32
    %c0_i32_1 = arith.constant 0 : i32
    return %arg0, %c0_i32, %c0_i32_0 : i32, i32, i32
  }
}

</mosaic_0001>

<llo_original>
// kernel: _stem.2
$region0: #{_stem.2}
  #allocation0 [shape = 'u32[]', space=smem, size = 0x4, offset = 0x4, fixed_abs, tag = 'smem constant byte address 0x4 - core index']
  #allocation1 [shape = 'u32[144,128]{1,0:T(1,128)}', space=vmem, size = 0x12000, scoped, tag = 'internal scratch']
  #allocation2 [shape = 'f32[512,64]{1,0:T(8,128)}', space=vmem, size = 0x40000, scoped, tag = 'scratch operand']
  %s0 = inlined_call_operand.hbm [shape: bf16[512,147], index: 0, kind: input, shape index: {}]
  %s1 = inlined_call_operand.hbm [shape: bf16[147,64], index: 1, kind: input, shape index: {}]
  %s2 = inlined_call_operand.hbm [shape: bf16[512,64], index: 2, kind: output, shape index: {}]
  %s3 = sld [smem:[#allocation0]]
  $region34: #{_stem.2} parent=0
    _
  %s5 = ssub.s32 1, %s3
  %s6 = scalar_select 0, %s5, %s3
  $region1: #{_stem.2} parent=0
    #allocation3 [shape = 'u8[262144]{0}', space=vmem, size = 0x40000, scoped, tag = 'input window, operand 0, single buffered']
    #allocation4 [shape = 's32[1]{0}', space=sflag, size = 0x4, scoped, tag = 'scoped memory for _stem.2']
    #allocation5 [shape = 's32[1]{0}', space=sflag, size = 0x4, scoped, tag = 'scoped memory for _stem.2']
    #allocation6 [shape = 'u8[38912]{0}', space=vmem, size = 0x9800, scoped, tag = 'input window, operand 1, single buffered']
    #allocation7 [shape = 's32[1]{0}', space=sflag, size = 0x4, scoped, tag = 'scoped memory for _stem.2']
    #allocation8 [shape = 'u8[131072]{0}', space=vmem, size = 0x20000, scoped, tag = 'output window, operand 0, single buffered']
    %7 = vsyncpa [#allocation4], 0
    %8 = vsyncpa [#allocation7], 0
    %9 = vsyncpa [#allocation5], 0
    // Predicated region
    $region2: #{_stem.2} parent=1 // pred_check
      _
    $region3: #{_stem.2} parent=1 // pred_check_branch
      %11 = sbr.rel (0) target = $region5
    $region4: #{_stem.2} parent=1 // pred_region
      %s13 = ssub.s32 8192, 8192
      %14 = vsyncadd [#allocation4], %s13
      %s15 = sshll.u32 [#allocation3], 4
      %s16 = int_to_ptr.vmem [resolvable:$true] %s15
      %21 = dma.hbm_to_vmem [thread:$0]  %s0, 8192, %s16, [#allocation4], 128, 128, 8
    $region5: #{_stem.2} parent=1 // pred_fallthru
      _
    // Predicated region
    $region6: #{_stem.2} parent=1 // pred_check
      _
    $region7: #{_stem.2} parent=1 // pred_check_branch
      %23 = sbr.rel (0) target = $region9
    $region8: #{_stem.2} parent=1 // pred_region
      %s25 = ssub.s32 1216, 1216
      %26 = vsyncadd [#allocation7], %s25
      %s27 = sshll.u32 [#allocation6], 4
      %s28 = int_to_ptr.vmem [resolvable:$true] %s27
      %33 = dma.hbm_to_vmem [thread:$0]  %s1, 1216, %s28, [#allocation7], 64, 64, 4
    $region9: #{_stem.2} parent=1 // pred_fallthru
      _
    // Predicated region
    $region10: #{_stem.2} parent=1 // pred_check
      _
    $region11: #{_stem.2} parent=1 // pred_check_branch
      %35 = sbr.rel (0) target = $region13
    $region12: #{_stem.2} parent=1 // pred_region
      %36 = dma.done [#allocation4], 8192
    $region13: #{_stem.2} parent=1 // pred_fallthru
      _
    // Predicated region
    $region14: #{_stem.2} parent=1 // pred_check
      _
    $region15: #{_stem.2} parent=1 // pred_check_branch
      %38 = sbr.rel (0) target = $region17
    $region16: #{_stem.2} parent=1 // pred_region
      %39 = dma.done [#allocation7], 1216
    $region17: #{_stem.2} parent=1 // pred_fallthru
      _
    %p41 = scmp.eq.s32.totalorder 0, 0
    // Predicated region
    $region18: #{_stem.2} parent=1 // pred_check
      %p42 = pneg %p41
    $region19: #{_stem.2} parent=1 // pred_check_branch
      %44 = sbr.rel (%p42) target = $region21
    $region20: #{_stem.2} parent=1 // pred_region
      %vm45 = vcmask 523264
      %46 = vst.msk [vmem:[#allocation2] sm:$0xff] %vm45, 0.0
      %47 = vst.msk [vmem:[#allocation2 + $0x8] sm:$0xff] %vm45, 0.0
      %48 = vst.msk [vmem:[#allocation2 + $0x10] sm:$0xff] %vm45, 0.0
      %49 = vst.msk [vmem:[#allocation2 + $0x18] sm:$0xff] %vm45, 0.0
      %50 = vst.msk [vmem:[#allocation2 + $0x20] sm:$0xff] %vm45, 0.0
      %51 = vst.msk [vmem:[#allocation2 + $0x28] sm:$0xff] %vm45, 0.0
      %52 = vst.msk [vmem:[#allocation2 + $0x30] sm:$0xff] %vm45, 0.0
      %53 = vst.msk [vmem:[#allocation2 + $0x38] sm:$0xff] %vm45, 0.0
      %54 = vst.msk [vmem:[#allocation2 + $0x40] sm:$0xff] %vm45, 0.0
      %55 = vst.msk [vmem:[#allocation2 + $0x48] sm:$0xff] %vm45, 0.0
      %56 = vst.msk [vmem:[#allocation2 + $0x50] sm:$0xff] %vm45, 0.0
      %57 = vst.msk [vmem:[#allocation2 + $0x58] sm:$0xff] %vm45, 0.0
      %58 = vst.msk [vmem:[#allocation2 + $0x60] sm:$0xff] %vm45, 0.0
      %59 = vst.msk [vmem:[#allocation2 + $0x68] sm:$0xff] %vm45, 0.0
      %60 = vst.msk [vmem:[#allocation2 + $0x70] sm:$0xff] %vm45, 0.0
      %61 = vst.msk [vmem:[#allocation2 + $0x78] sm:$0xff] %vm45, 0.0
      %62 = vst.msk [vmem:[#allocation2 + $0x80] sm:$0xff] %vm45, 0.0
      %63 = vst.msk [vmem:[#allocation2 + $0x88] sm:$0xff] %vm45, 0.0
      %64 = vst.msk [vmem:[#allocation2 + $0x90] sm:$0xff] %vm45, 0.0
      %65 = vst.msk [vmem:[#allocation2 + $0x98] sm:$0xff] %vm45, 0.0
      %66 = vst.msk [vmem:[#allocation2 + $0xa0] sm:$0xff] %vm45, 0.0
      %67 = vst.msk [vmem:[#allocation2 + $0xa8] sm:$0xff] %vm45, 0.0
      %68 = vst.msk [vmem:[#allocation2 + $0xb0] sm:$0xff] %vm45, 0.0
      %69 = vst.msk [vmem:[#allocation2 + $0xb8] sm:$0xff] %vm45, 0.0
      %70 = vst.msk [vmem:[#allocation2 + $0xc0] sm:$0xff] %vm45, 0.0
      %71 = vst.msk [vmem:[#allocation2 + $0xc8] sm:$0xff] %vm45, 0.0
      %72 = vst.msk [vmem:[#allocation2 + $0xd0] sm:$0xff] %vm45, 0.0
      %73 = vst.msk [vmem:[#allocation2 + $0xd8] sm:$0xff] %vm45, 0.0
      %74 = vst.msk [vmem:[#allocation2 + $0xe0] sm:$0xff] %vm45, 0.0
      %75 = vst.msk [vmem:[#allocation2 + $0xe8] sm:$0xff] %vm45, 0.0
      %76 = vst.msk [vmem:[#allocation2 + $0xf0] sm:$0xff] %vm45, 0.0
      %77 = vst.msk [vmem:[#allocation2 + $0xf8] sm:$0xff] %vm45, 0.0
      %78 = vst.msk [vmem:[#allocation2 + $0x100] sm:$0xff] %vm45, 0.0
      %79 = vst.msk [vmem:[#allocation2 + $0x108] sm:$0xff] %vm45, 0.0
      %80 = vst.msk [vmem:[#allocation2 + $0x110] sm:$0xff] %vm45, 0.0
      %81 = vst.msk [vmem:[#allocation2 + $0x118] sm:$0xff] %vm45, 0.0
      %82 = vst.msk [vmem:[#allocation2 + $0x120] sm:$0xff] %vm45, 0.0
      %83 = vst.msk [vmem:[#allocation2 + $0x128] sm:$0xff] %vm45, 0.0
      %84 = vst.msk [vmem:[#allocation2 + $0x130] sm:$0xff] %vm45, 0.0
      %85 = vst.msk [vmem:[#allocation2 + $0x138] sm:$0xff] %vm45, 0.0
      %86 = vst.msk [vmem:[#allocation2 + $0x140] sm:$0xff] %vm45, 0.0
      %87 = vst.msk [vmem:[#allocation2 + $0x148] sm:$0xff] %vm45, 0.0
      %88 = vst.msk [vmem:[#allocation2 + $0x150] sm:$0xff] %vm45, 0.0
      %89 = vst.msk [vmem:[#allocation2 + $0x158] sm:$0xff] %vm45, 0.0
      %90 = vst.msk [vmem:[#allocation2 + $0x160] sm:$0xff] %vm45, 0.0
      %91 = vst.msk [vmem:[#allocation2 + $0x168] sm:$0xff] %vm45, 0.0
      %92 = vst.msk [vmem:[#allocation2 + $0x170] sm:$0xff] %vm45, 0.0
      %93 = vst.msk [vmem:[#allocation2 + $0x178] sm:$0xff] %vm45, 0.0
      %94 = vst.msk [vmem:[#allocation2 + $0x180] sm:$0xff] %vm45, 0.0
      %95 = vst.msk [vmem:[#allocation2 + $0x188] sm:$0xff] %vm45, 0.0
      %96 = vst.msk [vmem:[#allocation2 + $0x190] sm:$0xff] %vm45, 0.0
      %97 = vst.msk [vmem:[#allocation2 + $0x198] sm:$0xff] %vm45, 0.0
      %98 = vst.msk [vmem:[#allocation2 + $0x1a0] sm:$0xff] %vm45, 0.0
      %99 = vst.msk [vmem:[#allocation2 + $0x1a8] sm:$0xff] %vm45, 0.0
      %100 = vst.msk [vmem:[#allocation2 + $0x1b0] sm:$0xff] %vm45, 0.0
      %101 = vst.msk [vmem:[#allocation2 + $0x1b8] sm:$0xff] %vm45, 0.0
      %102 = vst.msk [vmem:[#allocation2 + $0x1c0] sm:$0xff] %vm45, 0.0
      %103 = vst.msk [vmem:[#allocation2 + $0x1c8] sm:$0xff] %vm45, 0.0
      %104 = vst.msk [vmem:[#allocation2 + $0x1d0] sm:$0xff] %vm45, 0.0
      %105 = vst.msk [vmem:[#allocation2 + $0x1d8] sm:$0xff] %vm45, 0.0
      %106 = vst.msk [vmem:[#allocation2 + $0x1e0] sm:$0xff] %vm45, 0.0
      %107 = vst.msk [vmem:[#allocation2 + $0x1e8] sm:$0xff] %vm45, 0.0
      %108 = vst.msk [vmem:[#allocation2 + $0x1f0] sm:$0xff] %vm45, 0.0
      %109 = vst.msk [vmem:[#allocation2 + $0x1f8] sm:$0xff] %vm45, 0.0
    $region21: #{_stem.2} parent=1 // pred_fallthru
      _
    %v110 = vld [vmem:[#allocation2] sm:$0xff]
    %v111 = vld [vmem:[#allocation2 + $0x8] sm:$0xff]
    %v112 = vld [vmem:[#allocation2 + $0x10] sm:$0xff]
    %v113 = vld [vmem:[#allocation2 + $0x18] sm:$0xff]
    %v114 = vld [vmem:[#allocation2 + $0x20] sm:$0xff]
    %v115 = vld [vmem:[#allocation2 + $0x28] sm:$0xff]
    %v116 = vld [vmem:[#allocation2 + $0x30] sm:$0xff]
    %v117 = vld [vmem:[#allocation2 + $0x38] sm:$0xff]
    %v118 = vld [vmem:[#allocation2 + $0x40] sm:$0xff]
    %v119 = vld [vmem:[#allocation2 + $0x48] sm:$0xff]
    %v120 = vld [vmem:[#allocation2 + $0x50] sm:$0xff]
    %v121 = vld [vmem:[#allocation2 + $0x58] sm:$0xff]
    %v122 = vld [vmem:[#allocation2 + $0x60] sm:$0xff]
    %v123 = vld [vmem:[#allocation2 + $0x68] sm:$0xff]
    %v124 = vld [vmem:[#allocation2 + $0x70] sm:$0xff]
    %v125 = vld [vmem:[#allocation2 + $0x78] sm:$0xff]
    %v126 = vld [vmem:[#allocation2 + $0x80] sm:$0xff]
    %v127 = vld [vmem:[#allocation2 + $0x88] sm:$0xff]
    %v128 = vld [vmem:[#allocation2 + $0x90] sm:$0xff]
    %v129 = vld [vmem:[#allocation2 + $0x98] sm:$0xff]
    %v130 = vld [vmem:[#allocation2 + $0xa0] sm:$0xff]
    %v131 = vld [vmem:[#allocation2 + $0xa8] sm:$0xff]
    %v132 = vld [vmem:[#allocation2 + $0xb0] sm:$0xff]
    %v133 = vld [vmem:[#allocation2 + $0xb8] sm:$0xff]
    %v134 = vld [vmem:[#allocation2 + $0xc0] sm:$0xff]
    %v135 = vld [vmem:[#allocation2 + $0xc8] sm:$0xff]
    %v136 = vld [vmem:[#allocation2 + $0xd0] sm:$0xff]
    %v137 = vld [vmem:[#allocation2 + $0xd8] sm:$0xff]
    %v138 = vld [vmem:[#allocation2 + $0xe0] sm:$0xff]
    %v139 = vld [vmem:[#allocation2 + $0xe8] sm:$0xff]
    %v140 = vld [vmem:[#allocation2 + $0xf0] sm:$0xff]
    %v141 = vld [vmem:[#allocation2 + $0xf8] sm:$0xff]
    %v142 = vld [vmem:[#allocation2 + $0x100] sm:$0xff]
    %v143 = vld [vmem:[#allocation2 + $0x108] sm:$0xff]
    %v144 = vld [vmem:[#allocation2 + $0x110] sm:$0xff]
    %v145 = vld [vmem:[#allocation2 + $0x118] sm:$0xff]
    %v146 = vld [vmem:[#allocation2 + $0x120] sm:$0xff]
    %v147 = vld [vmem:[#allocation2 + $0x128] sm:$0xff]
    %v148 = vld [vmem:[#allocation2 + $0x130] sm:$0xff]
    %v149 = vld [vmem:[#allocation2 + $0x138] sm:$0xff]
    %v150 = vld [vmem:[#allocation2 + $0x140] sm:$0xff]
    %v151 = vld [vmem:[#allocation2 + $0x148] sm:$0xff]
    %v152 = vld [vmem:[#allocation2 + $0x150] sm:$0xff]
    %v153 = vld [vmem:[#allocation2 + $0x158] sm:$0xff]
    %v154 = vld [vmem:[#allocation2 + $0x160] sm:$0xff]
    %v155 = vld [vmem:[#allocation2 + $0x168] sm:$0xff]
    %v156 = vld [vmem:[#allocation2 + $0x170] sm:$0xff]
    %v157 = vld [vmem:[#allocation2 + $0x178] sm:$0xff]
    %v158 = vld [vmem:[#allocation2 + $0x180] sm:$0xff]
    %v159 = vld [vmem:[#allocation2 + $0x188] sm:$0xff]
    %v160 = vld [vmem:[#allocation2 + $0x190] sm:$0xff]
    %v161 = vld [vmem:[#allocation2 + $0x198] sm:$0xff]
    %v162 = vld [vmem:[#allocation2 + $0x1a0] sm:$0xff]
    %v163 = vld [vmem:[#allocation2 + $0x1a8] sm:$0xff]
    %v164 = vld [vmem:[#allocation2 + $0x1b0] sm:$0xff]
    %v165 = vld [vmem:[#allocation2 + $0x1b8] sm:$0xff]
    %v166 = vld [vmem:[#allocation2 + $0x1c0] sm:$0xff]
    %v167 = vld [vmem:[#allocation2 + $0x1c8] sm:$0xff]
    %v168 = vld [vmem:[#allocation2 + $0x1d0] sm:$0xff]
    %v169 = vld [vmem:[#allocation2 + $0x1d8] sm:$0xff]
    %v170 = vld [vmem:[#allocation2 + $0x1e0] sm:$0xff]
    %v171 = vld [vmem:[#allocation2 + $0x1e8] sm:$0xff]
    %v172 = vld [vmem:[#allocation2 + $0x1f0] sm:$0xff]
    %v173 = vld [vmem:[#allocation2 + $0x1f8] sm:$0xff]
    %v174 = vld [vmem:[#allocation3] sm:$0xff]
    %v175 = vld [vmem:[#allocation3 + $0x8] sm:$0xff]
    %v176 = vld [vmem:[#allocation3 + $0x10] sm:$0xff]
    %v177 = vld [vmem:[#allocation3 + $0x18] sm:$0xff]
    %v178 = vld [vmem:[#allocation3 + $0x20] sm:$0xff]
    %v179 = vld [vmem:[#allocation3 + $0x28] sm:$0xff]
    %v180 = vld [vmem:[#allocation3 + $0x30] sm:$0xff]
    %v181 = vld [vmem:[#allocation3 + $0x38] sm:$0xff]
    %v182 = vld [vmem:[#allocation3 + $0x40] sm:$0xff]
    %v183 = vld [vmem:[#allocation3 + $0x48] sm:$0xff]
    %v184 = vld [vmem:[#allocation3 + $0x50] sm:$0xff]
    %v185 = vld [vmem:[#allocation3 + $0x58] sm:$0xff]
    %v186 = vld [vmem:[#allocation3 + $0x60] sm:$0xff]
    %v187 = vld [vmem:[#allocation3 + $0x68] sm:$0xff]
    %v188 = vld [vmem:[#allocation3 + $0x70] sm:$0xff]
    %v189 = vld [vmem:[#allocation3 + $0x78] sm:$0xff]
    %v190 = vld [vmem:[#allocation3 + $0x80] sm:$0xff]
    %v191 = vld [vmem:[#allocation3 + $0x88] sm:$0xff]
    %v192 = vld [vmem:[#allocation3 + $0x90] sm:$0xff]
    %v193 = vld [vmem:[#allocation3 + $0x98] sm:$0xff]
    %v194 = vld [vmem:[#allocation3 + $0xa0] sm:$0xff]
    %v195 = vld [vmem:[#allocation3 + $0xa8] sm:$0xff]
    %v196 = vld [vmem:[#allocation3 + $0xb0] sm:$0xff]
    %v197 = vld [vmem:[#allocation3 + $0xb8] sm:$0xff]
    %v198 = vld [vmem:[#allocation3 + $0xc0] sm:$0xff]
    %v199 = vld [vmem:[#allocation3 + $0xc8] sm:$0xff]
    %v200 = vld [vmem:[#allocation3 + $0xd0] sm:$0xff]
    %v201 = vld [vmem:[#allocation3 + $0xd8] sm:$0xff]
    %v202 = vld [vmem:[#allocation3 + $0xe0] sm:$0xff]
    %v203 = vld [vmem:[#allocation3 + $0xe8] sm:$0xff]
    %v204 = vld [vmem:[#allocation3 + $0xf0] sm:$0xff]
    %v205 = vld [vmem:[#allocation3 + $0xf8] sm:$0xff]
    %v206 = vld [vmem:[#allocation3 + $0x100] sm:$0xff]
    %v207 = vld [vmem:[#allocation3 + $0x108] sm:$0xff]
    %v208 = vld [vmem:[#allocation3 + $0x110] sm:$0xff]
    %v209 = vld [vmem:[#allocation3 + $0x118] sm:$0xff]
    %v210 = vld [vmem:[#allocation3 + $0x120] sm:$0xff]
    %v211 = vld [vmem:[#allocation3 + $0x128] sm:$0xff]
    %v212 = vld [vmem:[#allocation3 + $0x130] sm:$0xff]
    %v213 = vld [vmem:[#allocation3 + $0x138] sm:$0xff]
    %v214 = vld [vmem:[#allocation3 + $0x140] sm:$0xff]
    %v215 = vld [vmem:[#allocation3 + $0x148] sm:$0xff]
    %v216 = vld [vmem:[#allocation3 + $0x150] sm:$0xff]
    %v217 = vld [vmem:[#allocation3 + $0x158] sm:$0xff]
    %v218 = vld [vmem:[#allocation3 + $0x160] sm:$0xff]
    %v219 = vld [vmem:[#allocation3 + $0x168] sm:$0xff]
    %v220 = vld [vmem:[#allocation3 + $0x170] sm:$0xff]
    %v221 = vld [vmem:[#allocation3 + $0x178] sm:$0xff]
    %v222 = vld [vmem:[#allocation3 + $0x180] sm:$0xff]
    %v223 = vld [vmem:[#allocation3 + $0x188] sm:$0xff]
    %v224 = vld [vmem:[#allocation3 + $0x190] sm:$0xff]
    %v225 = vld [vmem:[#allocation3 + $0x198] sm:$0xff]
    %v226 = vld [vmem:[#allocation3 + $0x1a0] sm:$0xff]
    %v227 = vld [vmem:[#allocation3 + $0x1a8] sm:$0xff]
    %v228 = vld [vmem:[#allocation3 + $0x1b0] sm:$0xff]
    %v229 = vld [vmem:[#allocation3 + $0x1b8] sm:$0xff]
    %v230 = vld [vmem:[#allocation3 + $0x1c0] sm:$0xff]
    %v231 = vld [vmem:[#allocation3 + $0x1c8] sm:$0xff]
    %v232 = vld [vmem:[#allocation3 + $0x1d0] sm:$0xff]
    %v233 = vld [vmem:[#allocation3 + $0x1d8] sm:$0xff]
    %v234 = vld [vmem:[#allocation3 + $0x1e0] sm:$0xff]
    %v235 = vld [vmem:[#allocation3 + $0x1e8] sm:$0xff]
    %v236 = vld [vmem:[#allocation3 + $0x1f0] sm:$0xff]
    %v237 = vld [vmem:[#allocation3 + $0x1f8] sm:$0xff]
    %v238 = vld [vmem:[#allocation6] sm:$0xf]
    %v239 = vld [vmem:[#allocation6 + $0x4] sm:$0xf]
    %v240 = vld [vmem:[#allocation6 + $0x8] sm:$0xf]
    %v241 = vld [vmem:[#allocation6 + $0xc] sm:$0xf]
    %v242 = vld [vmem:[#allocation6 + $0x10] sm:$0xf]
    %v243 = vld [vmem:[#allocation6 + $0x14] sm:$0xf]
    %v244 = vld [vmem:[#allocation6 + $0x18] sm:$0xf]
    %v245 = vld [vmem:[#allocation6 + $0x1c] sm:$0xf]
    %v246 = vld [vmem:[#allocation6 + $0x20] sm:$0xf]
    %v247 = vld [vmem:[#allocation6 + $0x24] sm:$0xf]
    %v248 = vld [vmem:[#allocation6 + $0x28] sm:$0xf]
    %v249 = vld [vmem:[#allocation6 + $0x2c] sm:$0xf]
    %v250 = vld [vmem:[#allocation6 + $0x30] sm:$0xf]
    %v251 = vld [vmem:[#allocation6 + $0x34] sm:$0xf]
    %v252 = vld [vmem:[#allocation6 + $0x38] sm:$0xf]
    %v253 = vld [vmem:[#allocation6 + $0x3c] sm:$0xf]
    %v254 = vld [vmem:[#allocation6 + $0x40] sm:$0xf]
    %v255 = vld [vmem:[#allocation6 + $0x44] sm:$0xf]
    %v256 = vld [vmem:[#allocation6 + $0x48] sm:$0x3]
    %v321 = vunpack.c.l.b16 %v174
    %v322 = vunpack.c.h.b16 %v174
    %v323 = vunpack.c.l.b16 %v175
    %v324 = vunpack.c.h.b16 %v175
    %v325 = vunpack.c.l.b16 %v176
    %v326 = vunpack.c.h.b16 %v176
    %v327 = vunpack.c.l.b16 %v177
    %v328 = vunpack.c.h.b16 %v177
    %v329 = vunpack.c.l.b16 %v178
    %v330 = vunpack.c.h.b16 %v178
    %v331 = vunpack.c.l.b16 %v179
    %v332 = vunpack.c.h.b16 %v179
    %v333 = vunpack.c.l.b16 %v180
    %v334 = vunpack.c.h.b16 %v180
    %v335 = vunpack.c.l.b16 %v181
    %v336 = vunpack.c.h.b16 %v181
    %v337 = vunpack.c.l.b16 %v182
    %v338 = vunpack.c.h.b16 %v182
    %v339 = vunpack.c.l.b16 %v183
    %v340 = vunpack.c.h.b16 %v183
    %v341 = vunpack.c.l.b16 %v184
    %v342 = vunpack.c.h.b16 %v184
    %v343 = vunpack.c.l.b16 %v185
    %v344 = vunpack.c.h.b16 %v185
    %v345 = vunpack.c.l.b16 %v186
    %v346 = vunpack.c.h.b16 %v186
    %v347 = vunpack.c.l.b16 %v187
    %v348 = vunpack.c.h.b16 %v187
    %v349 = vunpack.c.l.b16 %v188
    %v350 = vunpack.c.h.b16 %v188
    %v351 = vunpack.c.l.b16 %v189
    %v352 = vunpack.c.h.b16 %v189
    %v353 = vunpack.c.l.b16 %v190
    %v354 = vunpack.c.h.b16 %v190
    %v355 = vunpack.c.l.b16 %v191
    %v356 = vunpack.c.h.b16 %v191
    %v357 = vunpack.c.l.b16 %v192
    %v358 = vunpack.c.h.b16 %v192
    %v359 = vunpack.c.l.b16 %v193
    %v360 = vunpack.c.h.b16 %v193
    %v361 = vunpack.c.l.b16 %v194
    %v362 = vunpack.c.h.b16 %v194
    %v363 = vunpack.c.l.b16 %v195
    %v364 = vunpack.c.h.b16 %v195
    %v365 = vunpack.c.l.b16 %v196
    %v366 = vunpack.c.h.b16 %v196
    %v367 = vunpack.c.l.b16 %v197
    %v368 = vunpack.c.h.b16 %v197
    %v369 = vunpack.c.l.b16 %v198
    %v370 = vunpack.c.h.b16 %v198
    %v371 = vunpack.c.l.b16 %v199
    %v372 = vunpack.c.h.b16 %v199
    %v373 = vunpack.c.l.b16 %v200
    %v374 = vunpack.c.h.b16 %v200
    %v375 = vunpack.c.l.b16 %v201
    %v376 = vunpack.c.h.b16 %v201
    %v377 = vunpack.c.l.b16 %v202
    %v378 = vunpack.c.h.b16 %v202
    %v379 = vunpack.c.l.b16 %v203
    %v380 = vunpack.c.h.b16 %v203
    %v381 = vunpack.c.l.b16 %v204
    %v382 = vunpack.c.h.b16 %v204
    %v383 = vunpack.c.l.b16 %v205
    %v384 = vunpack.c.h.b16 %v205
    %v385 = vunpack.c.l.b16 %v206
    %v386 = vunpack.c.h.b16 %v206
    %v387 = vunpack.c.l.b16 %v207
    %v388 = vunpack.c.h.b16 %v207
    %v389 = vunpack.c.l.b16 %v208
    %v390 = vunpack.c.h.b16 %v208
    %v391 = vunpack.c.l.b16 %v209
    %v392 = vunpack.c.h.b16 %v209
    %v393 = vunpack.c.l.b16 %v210
    %v394 = vunpack.c.h.b16 %v210
    %v395 = vunpack.c.l.b16 %v211
    %v396 = vunpack.c.h.b16 %v211
    %v397 = vunpack.c.l.b16 %v212
    %v398 = vunpack.c.h.b16 %v212
    %v399 = vunpack.c.l.b16 %v213
    %v400 = vunpack.c.h.b16 %v213
    %v401 = vunpack.c.l.b16 %v214
    %v402 = vunpack.c.h.b16 %v214
    %v403 = vunpack.c.l.b16 %v215
    %v404 = vunpack.c.h.b16 %v215
    %v405 = vunpack.c.l.b16 %v216
    %v406 = vunpack.c.h.b16 %v216
    %v407 = vunpack.c.l.b16 %v217
    %v408 = vunpack.c.h.b16 %v217
    %v409 = vunpack.c.l.b16 %v218
    %v410 = vunpack.c.h.b16 %v218
    %v411 = vunpack.c.l.b16 %v219
    %v412 = vunpack.c.h.b16 %v219
    %v413 = vunpack.c.l.b16 %v220
    %v414 = vunpack.c.h.b16 %v220
    %v415 = vunpack.c.l.b16 %v221
    %v416 = vunpack.c.h.b16 %v221
    %v417 = vunpack.c.l.b16 %v222
    %v418 = vunpack.c.h.b16 %v222
    %v419 = vunpack.c.l.b16 %v223
    %v420 = vunpack.c.h.b16 %v223
    %v421 = vunpack.c.l.b16 %v224
    %v422 = vunpack.c.h.b16 %v224
    %v423 = vunpack.c.l.b16 %v225
    %v424 = vunpack.c.h.b16 %v225
    %v425 = vunpack.c.l.b16 %v226
    %v426 = vunpack.c.h.b16 %v226
    %v427 = vunpack.c.l.b16 %v227
    %v428 = vunpack.c.h.b16 %v227
    %v429 = vunpack.c.l.b16 %v228
    %v430 = vunpack.c.h.b16 %v228
    %v431 = vunpack.c.l.b16 %v229
    %v432 = vunpack.c.h.b16 %v229
    %v433 = vunpack.c.l.b16 %v230
    %v434 = vunpack.c.h.b16 %v230
    %v435 = vunpack.c.l.b16 %v231
    %v436 = vunpack.c.h.b16 %v231
    %v437 = vunpack.c.l.b16 %v232
    %v438 = vunpack.c.h.b16 %v232
    %v439 = vunpack.c.l.b16 %v233
    %v440 = vunpack.c.h.b16 %v233
    %v441 = vunpack.c.l.b16 %v234
    %v442 = vunpack.c.h.b16 %v234
    %v443 = vunpack.c.l.b16 %v235
    %v444 = vunpack.c.h.b16 %v235
    %v445 = vunpack.c.l.b16 %v236
    %v446 = vunpack.c.h.b16 %v236
    %v447 = vunpack.c.l.b16 %v237
    %v448 = vunpack.c.h.b16 %v237
    %v449 = vpack.c.b16 %v323, %v321
    %v450 = vpack.c.b16 %v324, %v322
    %v451 = vpack.c.b16 %v327, %v325
    %v452 = vpack.c.b16 %v328, %v326
    %v453 = vpack.c.b16 %v331, %v329
    %v454 = vpack.c.b16 %v332, %v330
    %v455 = vpack.c.b16 %v335, %v333
    %v456 = vpack.c.b16 %v336, %v334
    %v457 = vpack.c.b16 %v339, %v337
    %v458 = vpack.c.b16 %v340, %v338
    %v459 = vpack.c.b16 %v343, %v341
    %v460 = vpack.c.b16 %v344, %v342
    %v461 = vpack.c.b16 %v347, %v345
    %v462 = vpack.c.b16 %v348, %v346
    %v463 = vpack.c.b16 %v351, %v349
    %v464 = vpack.c.b16 %v352, %v350
    %v465 = vpack.c.b16 %v355, %v353
    %v466 = vpack.c.b16 %v356, %v354
    %v467 = vpack.c.b16 %v359, %v357
    %v468 = vpack.c.b16 %v360, %v358
    %v469 = vpack.c.b16 %v363, %v361
    %v470 = vpack.c.b16 %v364, %v362
    %v471 = vpack.c.b16 %v367, %v365
    %v472 = vpack.c.b16 %v368, %v366
    %v473 = vpack.c.b16 %v371, %v369
    %v474 = vpack.c.b16 %v372, %v370
    %v475 = vpack.c.b16 %v375, %v373
    %v476 = vpack.c.b16 %v376, %v374
    %v477 = vpack.c.b16 %v379, %v377
    %v478 = vpack.c.b16 %v380, %v378
    %v479 = vpack.c.b16 %v383, %v381
    %v480 = vpack.c.b16 %v384, %v382
    %v481 = vpack.c.b16 %v387, %v385
    %v482 = vpack.c.b16 %v388, %v386
    %v483 = vpack.c.b16 %v391, %v389
    %v484 = vpack.c.b16 %v392, %v390
    %v485 = vpack.c.b16 %v395, %v393
    %v486 = vpack.c.b16 %v396, %v394
    %v487 = vpack.c.b16 %v399, %v397
    %v488 = vpack.c.b16 %v400, %v398
    %v489 = vpack.c.b16 %v403, %v401
    %v490 = vpack.c.b16 %v404, %v402
    %v491 = vpack.c.b16 %v407, %v405
    %v492 = vpack.c.b16 %v408, %v406
    %v493 = vpack.c.b16 %v411, %v409
    %v494 = vpack.c.b16 %v412, %v410
    %v495 = vpack.c.b16 %v415, %v413
    %v496 = vpack.c.b16 %v416, %v414
    %v497 = vpack.c.b16 %v419, %v417
    %v498 = vpack.c.b16 %v420, %v418
    %v499 = vpack.c.b16 %v423, %v421
    %v500 = vpack.c.b16 %v424, %v422
    %v501 = vpack.c.b16 %v427, %v425
    %v502 = vpack.c.b16 %v428, %v426
    %v503 = vpack.c.b16 %v431, %v429
    %v504 = vpack.c.b16 %v432, %v430
    %v505 = vpack.c.b16 %v435, %v433
    %v506 = vpack.c.b16 %v436, %v434
    %v507 = vpack.c.b16 %v439, %v437
    %v508 = vpack.c.b16 %v440, %v438
    %v509 = vpack.c.b16 %v443, %v441
    %v510 = vpack.c.b16 %v444, %v442
    %v511 = vpack.c.b16 %v447, %v445
    %v512 = vpack.c.b16 %v448, %v446
    %v564 = vunpack.c.l.b16 %v238
    %v565 = vunpack.c.l.b16 %v239
    %v566 = vunpack.c.l.b16 %v240
    %v567 = vunpack.c.l.b16 %v241
    %v568 = vunpack.c.l.b16 %v242
    %v569 = vunpack.c.l.b16 %v243
    %v570 = vunpack.c.l.b16 %v244
    %v571 = vunpack.c.l.b16 %v245
    %v572 = vunpack.c.l.b16 %v246
    %v573 = vunpack.c.l.b16 %v247
    %v574 = vunpack.c.l.b16 %v248
    %v575 = vunpack.c.l.b16 %v249
    %v576 = vunpack.c.l.b16 %v250
    %v577 = vunpack.c.l.b16 %v251
    %v578 = vunpack.c.l.b16 %v252
    %v579 = vunpack.c.l.b16 %v253
    %v580 = vunpack.c.l.b16 %v254
    %v581 = vunpack.c.l.b16 %v255
    %v582 = vunpack.c.l.b16 %v256
    %v583 = vpack.c.b16 %v565, %v564
    %v584 = vpack.c.b16 %v567, %v566
    %v585 = vpack.c.b16 %v569, %v568
    %v586 = vpack.c.b16 %v571, %v570
    %v587 = vpack.c.b16 %v573, %v572
    %v588 = vpack.c.b16 %v575, %v574
    %v589 = vpack.c.b16 %v577, %v576
    %v590 = vpack.c.b16 %v579, %v578
    %v591 = vpack.c.b16 %v581, %v580
    %v592 = vpack.c.b16 %v582, %v582
    %vm602 = vcmask 154624
    %v604 = vsel %vm602, %v450, 0
    %v607 = vsel %vm602, %v452, 0
    %v610 = vsel %vm602, %v454, 0
    %v613 = vsel %vm602, %v456, 0
    %v616 = vsel %vm602, %v458, 0
    %v619 = vsel %vm602, %v460, 0
    %v622 = vsel %vm602, %v462, 0
    %v625 = vsel %vm602, %v464, 0
    %v628 = vsel %vm602, %v466, 0
    %v631 = vsel %vm602, %v468, 0
    %v634 = vsel %vm602, %v470, 0
    %v637 = vsel %vm602, %v472, 0
    %v640 = vsel %vm602, %v474, 0
    %v643 = vsel %vm602, %v476, 0
    %v646 = vsel %vm602, %v478, 0
    %v649 = vsel %vm602, %v480, 0
    %v652 = vsel %vm602, %v482, 0
    %v655 = vsel %vm602, %v484, 0
    %v658 = vsel %vm602, %v486, 0
    %v661 = vsel %vm602, %v488, 0
    %v664 = vsel %vm602, %v490, 0
    %v667 = vsel %vm602, %v492, 0
    %v670 = vsel %vm602, %v494, 0
    %v673 = vsel %vm602, %v496, 0
    %v676 = vsel %vm602, %v498, 0
    %v679 = vsel %vm602, %v500, 0
    %v682 = vsel %vm602, %v502, 0
    %v685 = vsel %vm602, %v504, 0
    %v688 = vsel %vm602, %v506, 0
    %v691 = vsel %vm602, %v508, 0
    %v694 = vsel %vm602, %v510, 0
    %v697 = vsel %vm602, %v512, 0
    %vm699 = vcmask 1040384
    %vm700 = vcmask 1041408
    %v701 = vsel %vm699, 4294967295, 65535
    %v702 = vsel %vm700, %v701, 0
    %v704 = vand.u32 %v592, %v702
    %706 = vmatprep.subr.bf16.mxu0 0
    %707 = vmatpush1.bf16.msra.mxu0 %v583
    %708 = vmatprep.subr.bf16.mxu0 0
    %709 = vmatpush1.bf16.msra.mxu0 %v584
    %710 = vmatprep.subr.bf16.mxu0 0
    %711 = vmatpush1.bf16.msra.mxu0 %v585
    %712 = vmatprep.subr.bf16.mxu0 0
    %713 = vmatpush1.bf16.msra.mxu0 %v586
    %714 = vmatprep.subr.bf16.mxu0 0
    %715 = vmatpush1.bf16.msra.mxu0 %v587
    %716 = vmatprep.subr.bf16.mxu0 0
    %717 = vmatpush1.bf16.msra.mxu0 %v588
    %718 = vmatprep.subr.bf16.mxu0 0
    %719 = vmatpush1.bf16.msra.mxu0 %v589
    %720 = vmatprep.subr.bf16.mxu0 0
    %721 = vmatpush1.bf16.msra.mxu0 %v590
    %722 = vmatprep.subr.bf16.mxu0 0
    %723 = vmatpush1.bf16.msra.mxu0 %v591
    %724 = vmatprep.subr.bf16.mxu0 0
    %725 = vmatpush1.bf16.msra.mxu0 %v704
    %726 = vmatprep.subr.bf16.mxu0 0
    %727 = vmatpush1.bf16.msra.mxu0 0
    %728 = vmatprep.subr.bf16.mxu0 0
    %729 = vmatpush1.bf16.msra.mxu0 0
    %730 = vmatprep.subr.bf16.mxu0 0
    %731 = vmatpush1.bf16.msra.mxu0 0
    %732 = vmatprep.subr.bf16.mxu0 0
    %733 = vmatpush1.bf16.msra.mxu0 0
    %734 = vmatprep.subr.bf16.mxu0 0
    %735 = vmatpush1.bf16.msra.mxu0 0
    %736 = vmatprep.subr.bf16.mxu0 0
    %737 = vmatpush1.bf16.msra.mxu0 0
    %738 = vmatprep.mubr.bf16.mxu0 %v604
    %739 = vmatmul.mubr.bf16.gmra.mrb[0].mxu0 %v449
    %v740 = vpop.f32.mrb[0].mxu0
    %v741 = vadd.f32 0.0, %v740
    %v742 = vpop.f32.mrb[0].mxu0
    %v743 = vpop.f32.mrb[0].mxu0
    %v744 = vadd.f32 0.0, %v743
    %v745 = vpop.f32.mrb[0].mxu0
    %746 = vmatprep.mubr.bf16.mxu0 %v607
    %747 = vmatmul.mubr.bf16.gmra.mrb[0].mxu0 %v451
    %v748 = vpop.f32.mrb[0].mxu0
    %v749 = vadd.f32 0.0, %v748
    %v750 = vpop.f32.mrb[0].mxu0
    %v751 = vpop.f32.mrb[0].mxu0
    %v752 = vadd.f32 0.0, %v751
    %v753 = vpop.f32.mrb[0].mxu0
    %754 = vmatprep.mubr.bf16.mxu0 %v610
    %755 = vmatmul.mubr.bf16.gmra.mrb[0].mxu0 %v453
    %v756 = vpop.f32.mrb[0].mxu0
    %v757 = vadd.f32 0.0, %v756
    %v758 = vpop.f32.mrb[0].mxu0
    %v759 = vpop.f32.mrb[0].mxu0
    %v760 = vadd.f32 0.0, %v759
    %v761 = vpop.f32.mrb[0].mxu0
    %762 = vmatprep.mubr.bf16.mxu0 %v613
    %763 = vmatmul.mubr.bf16.gmra.mrb[0].mxu0 %v455
    %v764 = vpop.f32.mrb[0].mxu0
    %v765 = vadd.f32 0.0, %v764
    %v766 = vpop.f32.mrb[0].mxu0
    %v767 = vpop.f32.mrb[0].mxu0
    %v768 = vadd.f32 0.0, %v767
    %v769 = vpop.f32.mrb[0].mxu0
    %770 = vmatprep.mubr.bf16.mxu0 %v616
    %771 = vmatmul.mubr.bf16.gmra.mrb[0].mxu0 %v457
    %v772 = vpop.f32.mrb[0].mxu0
    %v773 = vadd.f32 0.0, %v772
    %v774 = vpop.f32.mrb[0].mxu0
    %v775 = vpop.f32.mrb[0].mxu0
    %v776 = vadd.f32 0.0, %v775
    %v777 = vpop.f32.mrb[0].mxu0
    %778 = vmatprep.mubr.bf16.mxu0 %v619
    %779 = vmatmul.mubr.bf16.gmra.mrb[0].mxu0 %v459
    %v780 = vpop.f32.mrb[0].mxu0
    %v781 = vadd.f32 0.0, %v780
    %v782 = vpop.f32.mrb[0].mxu0
    %v783 = vpop.f32.mrb[0].mxu0
    %v784 = vadd.f32 0.0, %v783
    %v785 = vpop.f32.mrb[0].mxu0
    %786 = vmatprep.mubr.bf16.mxu0 %v622
    %787 = vmatmul.mubr.bf16.gmra.mrb[0].mxu0 %v461
    %v788 = vpop.f32.mrb[0].mxu0
    %v789 = vadd.f32 0.0, %v788
    %v790 = vpop.f32.mrb[0].mxu0
    %v791 = vpop.f32.mrb[0].mxu0
    %v792 = vadd.f32 0.0, %v791
    %v793 = vpop.f32.mrb[0].mxu0
    %794 = vmatprep.mubr.bf16.mxu0 %v625
    %795 = vmatmul.mubr.bf16.gmra.mrb[0].mxu0 %v463
    %v796 = vpop.f32.mrb[0].mxu0
    %v797 = vadd.f32 0.0, %v796
    %v798 = vpop.f32.mrb[0].mxu0
    %v799 = vpop.f32.mrb[0].mxu0
    %v800 = vadd.f32 0.0, %v799
    %v801 = vpop.f32.mrb[0].mxu0
    %802 = vmatprep.mubr.bf16.mxu0 %v628
    %803 = vmatmul.mubr.bf16.gmra.mrb[0].mxu0 %v465
    %v804 = vpop.f32.mrb[0].mxu0
    %v805 = vadd.f32 0.0, %v804
    %v806 = vpop.f32.mrb[0].mxu0
    %v807 = vpop.f32.mrb[0].mxu0
    %v808 = vadd.f32 0.0, %v807
    %v809 = vpop.f32.mrb[0].mxu0
    %810 = vmatprep.mubr.bf16.mxu0 %v631
    %811 = vmatmul.mubr.bf16.gmra.mrb[0].mxu0 %v467
    %v812 = vpop.f32.mrb[0].mxu0
    %v813 = vadd.f32 0.0, %v812
    %v814 = vpop.f32.mrb[0].mxu0
    %v815 = vpop.f32.mrb[0].mxu0
    %v816 = vadd.f32 0.0, %v815
    %v817 = vpop.f32.mrb[0].mxu0
    %818 = vmatprep.mubr.bf16.mxu0 %v634
    %819 = vmatmul.mubr.bf16.gmra.mrb[0].mxu0 %v469
    %v820 = vpop.f32.mrb[0].mxu0
    %v821 = vadd.f32 0.0, %v820
    %v822 = vpop.f32.mrb[0].mxu0
    %v823 = vpop.f32.mrb[0].mxu0
    %v824 = vadd.f32 0.0, %v823
    %v825 = vpop.f32.mrb[0].mxu0
    %826 = vmatprep.mubr.bf16.mxu0 %v637
    %827 = vmatmul.mubr.bf16.gmra.mrb[0].mxu0 %v471
    %v828 = vpop.f32.mrb[0].mxu0
    %v829 = vadd.f32 0.0, %v828
    %v830 = vpop.f32.mrb[0].mxu0
    %v831 = vpop.f32.mrb[0].mxu0
    %v832 = vadd.f32 0.0, %v831
    %v833 = vpop.f32.mrb[0].mxu0
    %834 = vmatprep.mubr.bf16.mxu0 %v640
    %835 = vmatmul.mubr.bf16.gmra.mrb[0].mxu0 %v473
    %v836 = vpop.f32.mrb[0].mxu0
    %v837 = vadd.f32 0.0, %v836
    %v838 = vpop.f32.mrb[0].mxu0
    %v839 = vpop.f32.mrb[0].mxu0
    %v840 = vadd.f32 0.0, %v839
    %v841 = vpop.f32.mrb[0].mxu0
    %842 = vmatprep.mubr.bf16.mxu0 %v643
    %843 = vmatmul.mubr.bf16.gmra.mrb[0].mxu0 %v475
    %v844 = vpop.f32.mrb[0].mxu0
    %v845 = vadd.f32 0.0, %v844
    %v846 = vpop.f32.mrb[0].mxu0
    %v847 = vpop.f32.mrb[0].mxu0
    %v848 = vadd.f32 0.0, %v847
    %v849 = vpop.f32.mrb[0].mxu0
    %850 = vmatprep.mubr.bf16.mxu0 %v646
    %851 = vmatmul.mubr.bf16.gmra.mrb[0].mxu0 %v477
    %v852 = vpop.f32.mrb[0].mxu0
    %v853 = vadd.f32 0.0, %v852
    %v854 = vpop.f32.mrb[0].mxu0
    %v855 = vpop.f32.mrb[0].mxu0
    %v856 = vadd.f32 0.0, %v855
    %v857 = vpop.f32.mrb[0].mxu0
    %858 = vmatprep.mubr.bf16.mxu0 %v649
    %859 = vmatmul.mubr.bf16.gmra.mrb[0].mxu0 %v479
    %v860 = vpop.f32.mrb[0].mxu0
    %v861 = vadd.f32 0.0, %v860
    %v862 = vpop.f32.mrb[0].mxu0
    %v863 = vpop.f32.mrb[0].mxu0
    %v864 = vadd.f32 0.0, %v863
    %v865 = vpop.f32.mrb[0].mxu0
    %866 = vmatprep.mubr.bf16.mxu0 %v652
    %867 = vmatmul.mubr.bf16.gmra.mrb[0].mxu0 %v481
    %v868 = vpop.f32.mrb[0].mxu0
    %v869 = vadd.f32 0.0, %v868
    %v870 = vpop.f32.mrb[0].mxu0
    %v871 = vpop.f32.mrb[0].mxu0
    %v872 = vadd.f32 0.0, %v871
    %v873 = vpop.f32.mrb[0].mxu0
    %874 = vmatprep.mubr.bf16.mxu0 %v655
    %875 = vmatmul.mubr.bf16.gmra.mrb[0].mxu0 %v483
    %v876 = vpop.f32.mrb[0].mxu0
    %v877 = vadd.f32 0.0, %v876
    %v878 = vpop.f32.mrb[0].mxu0
    %v879 = vpop.f32.mrb[0].mxu0
    %v880 = vadd.f32 0.0, %v879
    %v881 = vpop.f32.mrb[0].mxu0
    %882 = vmatprep.mubr.bf16.mxu0 %v658
    %883 = vmatmul.mubr.bf16.gmra.mrb[0].mxu0 %v485
    %v884 = vpop.f32.mrb[0].mxu0
    %v885 = vadd.f32 0.0, %v884
    %v886 = vpop.f32.mrb[0].mxu0
    %v887 = vpop.f32.mrb[0].mxu0
    %v888 = vadd.f32 0.0, %v887
    %v889 = vpop.f32.mrb[0].mxu0
    %890 = vmatprep.mubr.bf16.mxu0 %v661
    %891 = vmatmul.mubr.bf16.gmra.mrb[0].mxu0 %v487
    %v892 = vpop.f32.mrb[0].mxu0
    %v893 = vadd.f32 0.0, %v892
    %v894 = vpop.f32.mrb[0].mxu0
    %v895 = vpop.f32.mrb[0].mxu0
    %v896 = vadd.f32 0.0, %v895
    %v897 = vpop.f32.mrb[0].mxu0
    %898 = vmatprep.mubr.bf16.mxu0 %v664
    %899 = vmatmul.mubr.bf16.gmra.mrb[0].mxu0 %v489
    %v900 = vpop.f32.mrb[0].mxu0
    %v901 = vadd.f32 0.0, %v900
    %v902 = vpop.f32.mrb[0].mxu0
    %v903 = vpop.f32.mrb[0].mxu0
    %v904 = vadd.f32 0.0, %v903
    %v905 = vpop.f32.mrb[0].mxu0
    %906 = vmatprep.mubr.bf16.mxu0 %v667
    %907 = vmatmul.mubr.bf16.gmra.mrb[0].mxu0 %v491
    %v908 = vpop.f32.mrb[0].mxu0
    %v909 = vadd.f32 0.0, %v908
    %v910 = vpop.f32.mrb[0].mxu0
    %v911 = vpop.f32.mrb[0].mxu0
    %v912 = vadd.f32 0.0, %v911
    %v913 = vpop.f32.mrb[0].mxu0
    %914 = vmatprep.mubr.bf16.mxu0 %v670
    %915 = vmatmul.mubr.bf16.gmra.mrb[0].mxu0 %v493
    %v916 = vpop.f32.mrb[0].mxu0
    %v917 = vadd.f32 0.0, %v916
    %v918 = vpop.f32.mrb[0].mxu0
    %v919 = vpop.f32.mrb[0].mxu0
    %v920 = vadd.f32 0.0, %v919
    %v921 = vpop.f32.mrb[0].mxu0
    %922 = vmatprep.mubr.bf16.mxu0 %v673
    %923 = vmatmul.mubr.bf16.gmra.mrb[0].mxu0 %v495
    %v924 = vpop.f32.mrb[0].mxu0
    %v925 = vadd.f32 0.0, %v924
    %v926 = vpop.f32.mrb[0].mxu0
    %v927 = vpop.f32.mrb[0].mxu0
    %v928 = vadd.f32 0.0, %v927
    %v929 = vpop.f32.mrb[0].mxu0
    %930 = vmatprep.mubr.bf16.mxu0 %v676
    %931 = vmatmul.mubr.bf16.gmra.mrb[0].mxu0 %v497
    %v932 = vpop.f32.mrb[0].mxu0
    %v933 = vadd.f32 0.0, %v932
    %v934 = vpop.f32.mrb[0].mxu0
    %v935 = vpop.f32.mrb[0].mxu0
    %v936 = vadd.f32 0.0, %v935
    %v937 = vpop.f32.mrb[0].mxu0
    %938 = vmatprep.mubr.bf16.mxu0 %v679
    %939 = vmatmul.mubr.bf16.gmra.mrb[0].mxu0 %v499
    %v940 = vpop.f32.mrb[0].mxu0
    %v941 = vadd.f32 0.0, %v940
    %v942 = vpop.f32.mrb[0].mxu0
    %v943 = vpop.f32.mrb[0].mxu0
    %v944 = vadd.f32 0.0, %v943
    %v945 = vpop.f32.mrb[0].mxu0
    %946 = vmatprep.mubr.bf16.mxu0 %v682
    %947 = vmatmul.mubr.bf16.gmra.mrb[0].mxu0 %v501
    %v948 = vpop.f32.mrb[0].mxu0
    %v949 = vadd.f32 0.0, %v948
    %v950 = vpop.f32.mrb[0].mxu0
    %v951 = vpop.f32.mrb[0].mxu0
    %v952 = vadd.f32 0.0, %v951
    %v953 = vpop.f32.mrb[0].mxu0
    %954 = vmatprep.mubr.bf16.mxu0 %v685
    %955 = vmatmul.mubr.bf16.gmra.mrb[0].mxu0 %v503
    %v956 = vpop.f32.mrb[0].mxu0
    %v957 = vadd.f32 0.0, %v956
    %v958 = vpop.f32.mrb[0].mxu0
    %v959 = vpop.f32.mrb[0].mxu0
    %v960 = vadd.f32 0.0, %v959
    %v961 = vpop.f32.mrb[0].mxu0
    %962 = vmatprep.mubr.bf16.mxu0 %v688
    %963 = vmatmul.mubr.bf16.gmra.mrb[0].mxu0 %v505
    %v964 = vpop.f32.mrb[0].mxu0
    %v965 = vadd.f32 0.0, %v964
    %v966 = vpop.f32.mrb[0].mxu0
    %v967 = vpop.f32.mrb[0].mxu0
    %v968 = vadd.f32 0.0, %v967
    %v969 = vpop.f32.mrb[0].mxu0
    %970 = vmatprep.mubr.bf16.mxu0 %v691
    %971 = vmatmul.mubr.bf16.gmra.mrb[0].mxu0 %v507
    %v972 = vpop.f32.mrb[0].mxu0
    %v973 = vadd.f32 0.0, %v972
    %v974 = vpop.f32.mrb[0].mxu0
    %v975 = vpop.f32.mrb[0].mxu0
    %v976 = vadd.f32 0.0, %v975
    %v977 = vpop.f32.mrb[0].mxu0
    %978 = vmatprep.mubr.bf16.mxu0 %v694
    %979 = vmatmul.mubr.bf16.gmra.mrb[0].mxu0 %v509
    %v980 = vpop.f32.mrb[0].mxu0
    %v981 = vadd.f32 0.0, %v980
    %v982 = vpop.f32.mrb[0].mxu0
    %v983 = vpop.f32.mrb[0].mxu0
    %v984 = vadd.f32 0.0, %v983
    %v985 = vpop.f32.mrb[0].mxu0
    %986 = vmatprep.mubr.bf16.mxu0 %v697
    %987 = vmatmul.mubr.bf16.gmra.mrb[0].mxu0 %v511
    %v988 = vpop.f32.mrb[0].mxu0
    %v989 = vadd.f32 0.0, %v988
    %v990 = vpop.f32.mrb[0].mxu0
    %v991 = vpop.f32.mrb[0].mxu0
    %v992 = vadd.f32 0.0, %v991
    %v993 = vpop.f32.mrb[0].mxu0
    %994 = vdwg.mxu0
    %v995 = vadd.f32 %v110, %v741
    %v996 = vadd.f32 %v111, %v744
    %v997 = vadd.f32 %v112, %v749
    %v998 = vadd.f32 %v113, %v752
    %v999 = vadd.f32 %v114, %v757
    %v1000 = vadd.f32 %v115, %v760
    %v1001 = vadd.f32 %v116, %v765
    %v1002 = vadd.f32 %v117, %v768
    %v1003 = vadd.f32 %v118, %v773
    %v1004 = vadd.f32 %v119, %v776
    %v1005 = vadd.f32 %v120, %v781
    %v1006 = vadd.f32 %v121, %v784
    %v1007 = vadd.f32 %v122, %v789
    %v1008 = vadd.f32 %v123, %v792
    %v1009 = vadd.f32 %v124, %v797
    %v1010 = vadd.f32 %v125, %v800
    %v1011 = vadd.f32 %v126, %v805
    %v1012 = vadd.f32 %v127, %v808
    %v1013 = vadd.f32 %v128, %v813
    %v1014 = vadd.f32 %v129, %v816
    %v1015 = vadd.f32 %v130, %v821
    %v1016 = vadd.f32 %v131, %v824
    %v1017 = vadd.f32 %v132, %v829
    %v1018 = vadd.f32 %v133, %v832
    %v1019 = vadd.f32 %v134, %v837
    %v1020 = vadd.f32 %v135, %v840
    %v1021 = vadd.f32 %v136, %v845
    %v1022 = vadd.f32 %v137, %v848
    %v1023 = vadd.f32 %v138, %v853
    %v1024 = vadd.f32 %v139, %v856
    %v1025 = vadd.f32 %v140, %v861
    %v1026 = vadd.f32 %v141, %v864
    %v1027 = vadd.f32 %v142, %v869
    %v1028 = vadd.f32 %v143, %v872
    %v1029 = vadd.f32 %v144, %v877
    %v1030 = vadd.f32 %v145, %v880
    %v1031 = vadd.f32 %v146, %v885
    %v1032 = vadd.f32 %v147, %v888
    %v1033 = vadd.f32 %v148, %v893
    %v1034 = vadd.f32 %v149, %v896
    %v1035 = vadd.f32 %v150, %v901
    %v1036 = vadd.f32 %v151, %v904
    %v1037 = vadd.f32 %v152, %v909
    %v1038 = vadd.f32 %v153, %v912
    %v1039 = vadd.f32 %v154, %v917
    %v1040 = vadd.f32 %v155, %v920
    %v1041 = vadd.f32 %v156, %v925
    %v1042 = vadd.f32 %v157, %v928
    %v1043 = vadd.f32 %v158, %v933
    %v1044 = vadd.f32 %v159, %v936
    %v1045 = vadd.f32 %v160, %v941
    %v1046 = vadd.f32 %v161, %v944
    %v1047 = vadd.f32 %v162, %v949
    %v1048 = vadd.f32 %v163, %v952
    %v1049 = vadd.f32 %v164, %v957
    %v1050 = vadd.f32 %v165, %v960
    %v1051 = vadd.f32 %v166, %v965
    %v1052 = vadd.f32 %v167, %v968
    %v1053 = vadd.f32 %v168, %v973
    %v1054 = vadd.f32 %v169, %v976
    %v1055 = vadd.f32 %v170, %v981
    %v1056 = vadd.f32 %v171, %v984
    %v1057 = vadd.f32 %v172, %v989
    %v1058 = vadd.f32 %v173, %v992
    %vm1059 = vcmask 523264
    %1060 = vst.msk [vmem:[#allocation2] sm:$0xff] %vm1059, %v995
    %1061 = vst.msk [vmem:[#allocation2 + $0x8] sm:$0xff] %vm1059, %v996
    %1062 = vst.msk [vmem:[#allocation2 + $0x10] sm:$0xff] %vm1059, %v997
    %1063 = vst.msk [vmem:[#allocation2 + $0x18] sm:$0xff] %vm1059, %v998
    %1064 = vst.msk [vmem:[#allocation2 + $0x20] sm:$0xff] %vm1059, %v999
    %1065 = vst.msk [vmem:[#allocation2 + $0x28] sm:$0xff] %vm1059, %v1000
    %1066 = vst.msk [vmem:[#allocation2 + $0x30] sm:$0xff] %vm1059, %v1001
    %1067 = vst.msk [vmem:[#allocation2 + $0x38] sm:$0xff] %vm1059, %v1002
    %1068 = vst.msk [vmem:[#allocation2 + $0x40] sm:$0xff] %vm1059, %v1003
    %1069 = vst.msk [vmem:[#allocation2 + $0x48] sm:$0xff] %vm1059, %v1004
    %1070 = vst.msk [vmem:[#allocation2 + $0x50] sm:$0xff] %vm1059, %v1005
    %1071 = vst.msk [vmem:[#allocation2 + $0x58] sm:$0xff] %vm1059, %v1006
    %1072 = vst.msk [vmem:[#allocation2 + $0x60] sm:$0xff] %vm1059, %v1007
    %1073 = vst.msk [vmem:[#allocation2 + $0x68] sm:$0xff] %vm1059, %v1008
    %1074 = vst.msk [vmem:[#allocation2 + $0x70] sm:$0xff] %vm1059, %v1009
    %1075 = vst.msk [vmem:[#allocation2 + $0x78] sm:$0xff] %vm1059, %v1010
    %1076 = vst.msk [vmem:[#allocation2 + $0x80] sm:$0xff] %vm1059, %v1011
    %1077 = vst.msk [vmem:[#allocation2 + $0x88] sm:$0xff] %vm1059, %v1012
    %1078 = vst.msk [vmem:[#allocation2 + $0x90] sm:$0xff] %vm1059, %v1013
    %1079 = vst.msk [vmem:[#allocation2 + $0x98] sm:$0xff] %vm1059, %v1014
    %1080 = vst.msk [vmem:[#allocation2 + $0xa0] sm:$0xff] %vm1059, %v1015
    %1081 = vst.msk [vmem:[#allocation2 + $0xa8] sm:$0xff] %vm1059, %v1016
    %1082 = vst.msk [vmem:[#allocation2 + $0xb0] sm:$0xff] %vm1059, %v1017
    %1083 = vst.msk [vmem:[#allocation2 + $0xb8] sm:$0xff] %vm1059, %v1018
    %1084 = vst.msk [vmem:[#allocation2 + $0xc0] sm:$0xff] %vm1059, %v1019
    %1085 = vst.msk [vmem:[#allocation2 + $0xc8] sm:$0xff] %vm1059, %v1020
    %1086 = vst.msk [vmem:[#allocation2 + $0xd0] sm:$0xff] %vm1059, %v1021
    %1087 = vst.msk [vmem:[#allocation2 + $0xd8] sm:$0xff] %vm1059, %v1022
    %1088 = vst.msk [vmem:[#allocation2 + $0xe0] sm:$0xff] %vm1059, %v1023
    %1089 = vst.msk [vmem:[#allocation2 + $0xe8] sm:$0xff] %vm1059, %v1024
    %1090 = vst.msk [vmem:[#allocation2 + $0xf0] sm:$0xff] %vm1059, %v1025
    %1091 = vst.msk [vmem:[#allocation2 + $0xf8] sm:$0xff] %vm1059, %v1026
    %1092 = vst.msk [vmem:[#allocation2 + $0x100] sm:$0xff] %vm1059, %v1027
    %1093 = vst.msk [vmem:[#allocation2 + $0x108] sm:$0xff] %vm1059, %v1028
    %1094 = vst.msk [vmem:[#allocation2 + $0x110] sm:$0xff] %vm1059, %v1029
    %1095 = vst.msk [vmem:[#allocation2 + $0x118] sm:$0xff] %vm1059, %v1030
    %1096 = vst.msk [vmem:[#allocation2 + $0x120] sm:$0xff] %vm1059, %v1031
    %1097 = vst.msk [vmem:[#allocation2 + $0x128] sm:$0xff] %vm1059, %v1032
    %1098 = vst.msk [vmem:[#allocation2 + $0x130] sm:$0xff] %vm1059, %v1033
    %1099 = vst.msk [vmem:[#allocation2 + $0x138] sm:$0xff] %vm1059, %v1034
    %1100 = vst.msk [vmem:[#allocation2 + $0x140] sm:$0xff] %vm1059, %v1035
    %1101 = vst.msk [vmem:[#allocation2 + $0x148] sm:$0xff] %vm1059, %v1036
    %1102 = vst.msk [vmem:[#allocation2 + $0x150] sm:$0xff] %vm1059, %v1037
    %1103 = vst.msk [vmem:[#allocation2 + $0x158] sm:$0xff] %vm1059, %v1038
    %1104 = vst.msk [vmem:[#allocation2 + $0x160] sm:$0xff] %vm1059, %v1039
    %1105 = vst.msk [vmem:[#allocation2 + $0x168] sm:$0xff] %vm1059, %v1040
    %1106 = vst.msk [vmem:[#allocation2 + $0x170] sm:$0xff] %vm1059, %v1041
    %1107 = vst.msk [vmem:[#allocation2 + $0x178] sm:$0xff] %vm1059, %v1042
    %1108 = vst.msk [vmem:[#allocation2 + $0x180] sm:$0xff] %vm1059, %v1043
    %1109 = vst.msk [vmem:[#allocation2 + $0x188] sm:$0xff] %vm1059, %v1044
    %1110 = vst.msk [vmem:[#allocation2 + $0x190] sm:$0xff] %vm1059, %v1045
    %1111 = vst.msk [vmem:[#allocation2 + $0x198] sm:$0xff] %vm1059, %v1046
    %1112 = vst.msk [vmem:[#allocation2 + $0x1a0] sm:$0xff] %vm1059, %v1047
    %1113 = vst.msk [vmem:[#allocation2 + $0x1a8] sm:$0xff] %vm1059, %v1048
    %1114 = vst.msk [vmem:[#allocation2 + $0x1b0] sm:$0xff] %vm1059, %v1049
    %1115 = vst.msk [vmem:[#allocation2 + $0x1b8] sm:$0xff] %vm1059, %v1050
    %1116 = vst.msk [vmem:[#allocation2 + $0x1c0] sm:$0xff] %vm1059, %v1051
    %1117 = vst.msk [vmem:[#allocation2 + $0x1c8] sm:$0xff] %vm1059, %v1052
    %1118 = vst.msk [vmem:[#allocation2 + $0x1d0] sm:$0xff] %vm1059, %v1053
    %1119 = vst.msk [vmem:[#allocation2 + $0x1d8] sm:$0xff] %vm1059, %v1054
    %1120 = vst.msk [vmem:[#allocation2 + $0x1e0] sm:$0xff] %vm1059, %v1055
    %1121 = vst.msk [vmem:[#allocation2 + $0x1e8] sm:$0xff] %vm1059, %v1056
    %1122 = vst.msk [vmem:[#allocation2 + $0x1f0] sm:$0xff] %vm1059, %v1057
    %1123 = vst.msk [vmem:[#allocation2 + $0x1f8] sm:$0xff] %vm1059, %v1058
    // Predicated region
    $region22: #{_stem.2} parent=1 // pred_check
      %p1124 = pneg %p41
    $region23: #{_stem.2} parent=1 // pred_check_branch
      %1126 = sbr.rel (%p1124) target = $region25
    $region24: #{_stem.2} parent=1 // pred_region
      %v1127 = vld [vmem:[#allocation2] sm:$0xff]
      %v1128 = vld [vmem:[#allocation2 + $0x8] sm:$0xff]
      %v1129 = vld [vmem:[#allocation2 + $0x10] sm:$0xff]
      %v1130 = vld [vmem:[#allocation2 + $0x18] sm:$0xff]
      %v1131 = vld [vmem:[#allocation2 + $0x20] sm:$0xff]
      %v1132 = vld [vmem:[#allocation2 + $0x28] sm:$0xff]
      %v1133 = vld [vmem:[#allocation2 + $0x30] sm:$0xff]
      %v1134 = vld [vmem:[#allocation2 + $0x38] sm:$0xff]
      %v1135 = vld [vmem:[#allocation2 + $0x40] sm:$0xff]
      %v1136 = vld [vmem:[#allocation2 + $0x48] sm:$0xff]
      %v1137 = vld [vmem:[#allocation2 + $0x50] sm:$0xff]
      %v1138 = vld [vmem:[#allocation2 + $0x58] sm:$0xff]
      %v1139 = vld [vmem:[#allocation2 + $0x60] sm:$0xff]
      %v1140 = vld [vmem:[#allocation2 + $0x68] sm:$0xff]
      %v1141 = vld [vmem:[#allocation2 + $0x70] sm:$0xff]
      %v1142 = vld [vmem:[#allocation2 + $0x78] sm:$0xff]
      %v1143 = vld [vmem:[#allocation2 + $0x80] sm:$0xff]
      %v1144 = vld [vmem:[#allocation2 + $0x88] sm:$0xff]
      %v1145 = vld [vmem:[#allocation2 + $0x90] sm:$0xff]
      %v1146 = vld [vmem:[#allocation2 + $0x98] sm:$0xff]
      %v1147 = vld [vmem:[#allocation2 + $0xa0] sm:$0xff]
      %v1148 = vld [vmem:[#allocation2 + $0xa8] sm:$0xff]
      %v1149 = vld [vmem:[#allocation2 + $0xb0] sm:$0xff]
      %v1150 = vld [vmem:[#allocation2 + $0xb8] sm:$0xff]
      %v1151 = vld [vmem:[#allocation2 + $0xc0] sm:$0xff]
      %v1152 = vld [vmem:[#allocation2 + $0xc8] sm:$0xff]
      %v1153 = vld [vmem:[#allocation2 + $0xd0] sm:$0xff]
      %v1154 = vld [vmem:[#allocation2 + $0xd8] sm:$0xff]
      %v1155 = vld [vmem:[#allocation2 + $0xe0] sm:$0xff]
      %v1156 = vld [vmem:[#allocation2 + $0xe8] sm:$0xff]
      %v1157 = vld [vmem:[#allocation2 + $0xf0] sm:$0xff]
      %v1158 = vld [vmem:[#allocation2 + $0xf8] sm:$0xff]
      %v1159 = vld [vmem:[#allocation2 + $0x100] sm:$0xff]
      %v1160 = vld [vmem:[#allocation2 + $0x108] sm:$0xff]
      %v1161 = vld [vmem:[#allocation2 + $0x110] sm:$0xff]
      %v1162 = vld [vmem:[#allocation2 + $0x118] sm:$0xff]
      %v1163 = vld [vmem:[#allocation2 + $0x120] sm:$0xff]
      %v1164 = vld [vmem:[#allocation2 + $0x128] sm:$0xff]
      %v1165 = vld [vmem:[#allocation2 + $0x130] sm:$0xff]
      %v1166 = vld [vmem:[#allocation2 + $0x138] sm:$0xff]
      %v1167 = vld [vmem:[#allocation2 + $0x140] sm:$0xff]
      %v1168 = vld [vmem:[#allocation2 + $0x148] sm:$0xff]
      %v1169 = vld [vmem:[#allocation2 + $0x150] sm:$0xff]
      %v1170 = vld [vmem:[#allocation2 + $0x158] sm:$0xff]
      %v1171 = vld [vmem:[#allocation2 + $0x160] sm:$0xff]
      %v1172 = vld [vmem:[#allocation2 + $0x168] sm:$0xff]
      %v1173 = vld [vmem:[#allocation2 + $0x170] sm:$0xff]
      %v1174 = vld [vmem:[#allocation2 + $0x178] sm:$0xff]
      %v1175 = vld [vmem:[#allocation2 + $0x180] sm:$0xff]
      %v1176 = vld [vmem:[#allocation2 + $0x188] sm:$0xff]
      %v1177 = vld [vmem:[#allocation2 + $0x190] sm:$0xff]
      %v1178 = vld [vmem:[#allocation2 + $0x198] sm:$0xff]
      %v1179 = vld [vmem:[#allocation2 + $0x1a0] sm:$0xff]
      %v1180 = vld [vmem:[#allocation2 + $0x1a8] sm:$0xff]
      %v1181 = vld [vmem:[#allocation2 + $0x1b0] sm:$0xff]
      %v1182 = vld [vmem:[#allocation2 + $0x1b8] sm:$0xff]
      %v1183 = vld [vmem:[#allocation2 + $0x1c0] sm:$0xff]
      %v1184 = vld [vmem:[#allocation2 + $0x1c8] sm:$0xff]
      %v1185 = vld [vmem:[#allocation2 + $0x1d0] sm:$0xff]
      %v1186 = vld [vmem:[#allocation2 + $0x1d8] sm:$0xff]
      %v1187 = vld [vmem:[#allocation2 + $0x1e0] sm:$0xff]
      %v1188 = vld [vmem:[#allocation2 + $0x1e8] sm:$0xff]
      %v1189 = vld [vmem:[#allocation2 + $0x1f0] sm:$0xff]
      %v1190 = vld [vmem:[#allocation2 + $0x1f8] sm:$0xff]
      %v1191 = vpack.c.bf16 %v1128, %v1127
      %v1192 = vpack.c.bf16 %v1130, %v1129
      %v1193 = vpack.c.bf16 %v1132, %v1131
      %v1194 = vpack.c.bf16 %v1134, %v1133
      %v1195 = vpack.c.bf16 %v1136, %v1135
      %v1196 = vpack.c.bf16 %v1138, %v1137
      %v1197 = vpack.c.bf16 %v1140, %v1139
      %v1198 = vpack.c.bf16 %v1142, %v1141
      %v1199 = vpack.c.bf16 %v1144, %v1143
      %v1200 = vpack.c.bf16 %v1146, %v1145
      %v1201 = vpack.c.bf16 %v1148, %v1147
      %v1202 = vpack.c.bf16 %v1150, %v1149
      %v1203 = vpack.c.bf16 %v1152, %v1151
      %v1204 = vpack.c.bf16 %v1154, %v1153
      %v1205 = vpack.c.bf16 %v1156, %v1155
      %v1206 = vpack.c.bf16 %v1158, %v1157
      %v1207 = vpack.c.bf16 %v1160, %v1159
      %v1208 = vpack.c.bf16 %v1162, %v1161
      %v1209 = vpack.c.bf16 %v1164, %v1163
      %v1210 = vpack.c.bf16 %v1166, %v1165
      %v1211 = vpack.c.bf16 %v1168, %v1167
      %v1212 = vpack.c.bf16 %v1170, %v1169
      %v1213 = vpack.c.bf16 %v1172, %v1171
      %v1214 = vpack.c.bf16 %v1174, %v1173
      %v1215 = vpack.c.bf16 %v1176, %v1175
      %v1216 = vpack.c.bf16 %v1178, %v1177
      %v1217 = vpack.c.bf16 %v1180, %v1179
      %v1218 = vpack.c.bf16 %v1182, %v1181
      %v1219 = vpack.c.bf16 %v1184, %v1183
      %v1220 = vpack.c.bf16 %v1186, %v1185
      %v1221 = vpack.c.bf16 %v1188, %v1187
      %v1222 = vpack.c.bf16 %v1190, %v1189
      %v1255 = vunpack.c.l.b16 %v1191
      %v1256 = vunpack.c.h.b16 %v1191
      %v1257 = vunpack.c.l.b16 %v1192
      %v1258 = vunpack.c.h.b16 %v1192
      %v1259 = vunpack.c.l.b16 %v1193
      %v1260 = vunpack.c.h.b16 %v1193
      %v1261 = vunpack.c.l.b16 %v1194
      %v1262 = vunpack.c.h.b16 %v1194
      %v1263 = vunpack.c.l.b16 %v1195
      %v1264 = vunpack.c.h.b16 %v1195
      %v1265 = vunpack.c.l.b16 %v1196
      %v1266 = vunpack.c.h.b16 %v1196
      %v1267 = vunpack.c.l.b16 %v1197
      %v1268 = vunpack.c.h.b16 %v1197
      %v1269 = vunpack.c.l.b16 %v1198
      %v1270 = vunpack.c.h.b16 %v1198
      %v1271 = vunpack.c.l.b16 %v1199
      %v1272 = vunpack.c.h.b16 %v1199
      %v1273 = vunpack.c.l.b16 %v1200
      %v1274 = vunpack.c.h.b16 %v1200
      %v1275 = vunpack.c.l.b16 %v1201
      %v1276 = vunpack.c.h.b16 %v1201
      %v1277 = vunpack.c.l.b16 %v1202
      %v1278 = vunpack.c.h.b16 %v1202
      %v1279 = vunpack.c.l.b16 %v1203
      %v1280 = vunpack.c.h.b16 %v1203
      %v1281 = vunpack.c.l.b16 %v1204
      %v1282 = vunpack.c.h.b16 %v1204
      %v1283 = vunpack.c.l.b16 %v1205
      %v1284 = vunpack.c.h.b16 %v1205
      %v1285 = vunpack.c.l.b16 %v1206
      %v1286 = vunpack.c.h.b16 %v1206
      %v1287 = vunpack.c.l.b16 %v1207
      %v1288 = vunpack.c.h.b16 %v1207
      %v1289 = vunpack.c.l.b16 %v1208
      %v1290 = vunpack.c.h.b16 %v1208
      %v1291 = vunpack.c.l.b16 %v1209
      %v1292 = vunpack.c.h.b16 %v1209
      %v1293 = vunpack.c.l.b16 %v1210
      %v1294 = vunpack.c.h.b16 %v1210
      %v1295 = vunpack.c.l.b16 %v1211
      %v1296 = vunpack.c.h.b16 %v1211
      %v1297 = vunpack.c.l.b16 %v1212
      %v1298 = vunpack.c.h.b16 %v1212
      %v1299 = vunpack.c.l.b16 %v1213
      %v1300 = vunpack.c.h.b16 %v1213
      %v1301 = vunpack.c.l.b16 %v1214
      %v1302 = vunpack.c.h.b16 %v1214
      %v1303 = vunpack.c.l.b16 %v1215
      %v1304 = vunpack.c.h.b16 %v1215
      %v1305 = vunpack.c.l.b16 %v1216
      %v1306 = vunpack.c.h.b16 %v1216
      %v1307 = vunpack.c.l.b16 %v1217
      %v1308 = vunpack.c.h.b16 %v1217
      %v1309 = vunpack.c.l.b16 %v1218
      %v1310 = vunpack.c.h.b16 %v1218
      %v1311 = vunpack.c.l.b16 %v1219
      %v1312 = vunpack.c.h.b16 %v1219
      %v1313 = vunpack.c.l.b16 %v1220
      %v1314 = vunpack.c.h.b16 %v1220
      %v1315 = vunpack.c.l.b16 %v1221
      %v1316 = vunpack.c.h.b16 %v1221
      %v1317 = vunpack.c.l.b16 %v1222
      %v1318 = vunpack.c.h.b16 %v1222
      %v1319 = vpack.c.b16 %v1255, %v1255
      %v1320 = vpack.c.b16 %v1256, %v1256
      %v1321 = vpack.c.b16 %v1257, %v1257
      %v1322 = vpack.c.b16 %v1258, %v1258
      %v1323 = vpack.c.b16 %v1259, %v1259
      %v1324 = vpack.c.b16 %v1260, %v1260
      %v1325 = vpack.c.b16 %v1261, %v1261
      %v1326 = vpack.c.b16 %v1262, %v1262
      %v1327 = vpack.c.b16 %v1263, %v1263
      %v1328 = vpack.c.b16 %v1264, %v1264
      %v1329 = vpack.c.b16 %v1265, %v1265
      %v1330 = vpack.c.b16 %v1266, %v1266
      %v1331 = vpack.c.b16 %v1267, %v1267
      %v1332 = vpack.c.b16 %v1268, %v1268
      %v1333 = vpack.c.b16 %v1269, %v1269
      %v1334 = vpack.c.b16 %v1270, %v1270
      %v1335 = vpack.c.b16 %v1271, %v1271
      %v1336 = vpack.c.b16 %v1272, %v1272
      %v1337 = vpack.c.b16 %v1273, %v1273
      %v1338 = vpack.c.b16 %v1274, %v1274
      %v1339 = vpack.c.b16 %v1275, %v1275
      %v1340 = vpack.c.b16 %v1276, %v1276
      %v1341 = vpack.c.b16 %v1277, %v1277
      %v1342 = vpack.c.b16 %v1278, %v1278
      %v1343 = vpack.c.b16 %v1279, %v1279
      %v1344 = vpack.c.b16 %v1280, %v1280
      %v1345 = vpack.c.b16 %v1281, %v1281
      %v1346 = vpack.c.b16 %v1282, %v1282
      %v1347 = vpack.c.b16 %v1283, %v1283
      %v1348 = vpack.c.b16 %v1284, %v1284
      %v1349 = vpack.c.b16 %v1285, %v1285
      %v1350 = vpack.c.b16 %v1286, %v1286
      %v1351 = vpack.c.b16 %v1287, %v1287
      %v1352 = vpack.c.b16 %v1288, %v1288
      %v1353 = vpack.c.b16 %v1289, %v1289
      %v1354 = vpack.c.b16 %v1290, %v1290
      %v1355 = vpack.c.b16 %v1291, %v1291
      %v1356 = vpack.c.b16 %v1292, %v1292
      %v1357 = vpack.c.b16 %v1293, %v1293
      %v1358 = vpack.c.b16 %v1294, %v1294
      %v1359 = vpack.c.b16 %v1295, %v1295
      %v1360 = vpack.c.b16 %v1296, %v1296
      %v1361 = vpack.c.b16 %v1297, %v1297
      %v1362 = vpack.c.b16 %v1298, %v1298
      %v1363 = vpack.c.b16 %v1299, %v1299
      %v1364 = vpack.c.b16 %v1300, %v1300
      %v1365 = vpack.c.b16 %v1301, %v1301
      %v1366 = vpack.c.b16 %v1302, %v1302
      %v1367 = vpack.c.b16 %v1303, %v1303
      %v1368 = vpack.c.b16 %v1304, %v1304
      %v1369 = vpack.c.b16 %v1305, %v1305
      %v1370 = vpack.c.b16 %v1306, %v1306
      %v1371 = vpack.c.b16 %v1307, %v1307
      %v1372 = vpack.c.b16 %v1308, %v1308
      %v1373 = vpack.c.b16 %v1309, %v1309
      %v1374 = vpack.c.b16 %v1310, %v1310
      %v1375 = vpack.c.b16 %v1311, %v1311
      %v1376 = vpack.c.b16 %v1312, %v1312
      %v1377 = vpack.c.b16 %v1313, %v1313
      %v1378 = vpack.c.b16 %v1314, %v1314
      %v1379 = vpack.c.b16 %v1315, %v1315
      %v1380 = vpack.c.b16 %v1316, %v1316
      %v1381 = vpack.c.b16 %v1317, %v1317
      %v1382 = vpack.c.b16 %v1318, %v1318
      %vm1447 = vcmask 519168
      %1448 = vst.msk [vmem:[#allocation8] sm:$0xf] %vm1447, %v1319
      %1449 = vst.msk [vmem:[#allocation8 + $0x4] sm:$0xf] %vm1447, %v1320
      %1450 = vst.msk [vmem:[#allocation8 + $0x8] sm:$0xf] %vm1447, %v1321
      %1451 = vst.msk [vmem:[#allocation8 + $0xc] sm:$0xf] %vm1447, %v1322
      %1452 = vst.msk [vmem:[#allocation8 + $0x10] sm:$0xf] %vm1447, %v1323
      %1453 = vst.msk [vmem:[#allocation8 + $0x14] sm:$0xf] %vm1447, %v1324
      %1454 = vst.msk [vmem:[#allocation8 + $0x18] sm:$0xf] %vm1447, %v1325
      %1455 = vst.msk [vmem:[#allocation8 + $0x1c] sm:$0xf] %vm1447, %v1326
      %1456 = vst.msk [vmem:[#allocation8 + $0x20] sm:$0xf] %vm1447, %v1327
      %1457 = vst.msk [vmem:[#allocation8 + $0x24] sm:$0xf] %vm1447, %v1328
      %1458 = vst.msk [vmem:[#allocation8 + $0x28] sm:$0xf] %vm1447, %v1329
      %1459 = vst.msk [vmem:[#allocation8 + $0x2c] sm:$0xf] %vm1447, %v1330
      %1460 = vst.msk [vmem:[#allocation8 + $0x30] sm:$0xf] %vm1447, %v1331
      %1461 = vst.msk [vmem:[#allocation8 + $0x34] sm:$0xf] %vm1447, %v1332
      %1462 = vst.msk [vmem:[#allocation8 + $0x38] sm:$0xf] %vm1447, %v1333
      %1463 = vst.msk [vmem:[#allocation8 + $0x3c] sm:$0xf] %vm1447, %v1334
      %1464 = vst.msk [vmem:[#allocation8 + $0x40] sm:$0xf] %vm1447, %v1335
      %1465 = vst.msk [vmem:[#allocation8 + $0x44] sm:$0xf] %vm1447, %v1336
      %1466 = vst.msk [vmem:[#allocation8 + $0x48] sm:$0xf] %vm1447, %v1337
      %1467 = vst.msk [vmem:[#allocation8 + $0x4c] sm:$0xf] %vm1447, %v1338
      %1468 = vst.msk [vmem:[#allocation8 + $0x50] sm:$0xf] %vm1447, %v1339
      %1469 = vst.msk [vmem:[#allocation8 + $0x54] sm:$0xf] %vm1447, %v1340
      %1470 = vst.msk [vmem:[#allocation8 + $0x58] sm:$0xf] %vm1447, %v1341
      %1471 = vst.msk [vmem:[#allocation8 + $0x5c] sm:$0xf] %vm1447, %v1342
      %1472 = vst.msk [vmem:[#allocation8 + $0x60] sm:$0xf] %vm1447, %v1343
      %1473 = vst.msk [vmem:[#allocation8 + $0x64] sm:$0xf] %vm1447, %v1344
      %1474 = vst.msk [vmem:[#allocation8 + $0x68] sm:$0xf] %vm1447, %v1345
      %1475 = vst.msk [vmem:[#allocation8 + $0x6c] sm:$0xf] %vm1447, %v1346
      %1476 = vst.msk [vmem:[#allocation8 + $0x70] sm:$0xf] %vm1447, %v1347
      %1477 = vst.msk [vmem:[#allocation8 + $0x74] sm:$0xf] %vm1447, %v1348
      %1478 = vst.msk [vmem:[#allocation8 + $0x78] sm:$0xf] %vm1447, %v1349
      %1479 = vst.msk [vmem:[#allocation8 + $0x7c] sm:$0xf] %vm1447, %v1350
      %1480 = vst.msk [vmem:[#allocation8 + $0x80] sm:$0xf] %vm1447, %v1351
      %1481 = vst.msk [vmem:[#allocation8 + $0x84] sm:$0xf] %vm1447, %v1352
      %1482 = vst.msk [vmem:[#allocation8 + $0x88] sm:$0xf] %vm1447, %v1353
      %1483 = vst.msk [vmem:[#allocation8 + $0x8c] sm:$0xf] %vm1447, %v1354
      %1484 = vst.msk [vmem:[#allocation8 + $0x90] sm:$0xf] %vm1447, %v1355
      %1485 = vst.msk [vmem:[#allocation8 + $0x94] sm:$0xf] %vm1447, %v1356
      %1486 = vst.msk [vmem:[#allocation8 + $0x98] sm:$0xf] %vm1447, %v1357
      %1487 = vst.msk [vmem:[#allocation8 + $0x9c] sm:$0xf] %vm1447, %v1358
      %1488 = vst.msk [vmem:[#allocation8 + $0xa0] sm:$0xf] %vm1447, %v1359
      %1489 = vst.msk [vmem:[#allocation8 + $0xa4] sm:$0xf] %vm1447, %v1360
      %1490 = vst.msk [vmem:[#allocation8 + $0xa8] sm:$0xf] %vm1447, %v1361
      %1491 = vst.msk [vmem:[#allocation8 + $0xac] sm:$0xf] %vm1447, %v1362
      %1492 = vst.msk [vmem:[#allocation8 + $0xb0] sm:$0xf] %vm1447, %v1363
      %1493 = vst.msk [vmem:[#allocation8 + $0xb4] sm:$0xf] %vm1447, %v1364
      %1494 = vst.msk [vmem:[#allocation8 + $0xb8] sm:$0xf] %vm1447, %v1365
      %1495 = vst.msk [vmem:[#allocation8 + $0xbc] sm:$0xf] %vm1447, %v1366
      %1496 = vst.msk [vmem:[#allocation8 + $0xc0] sm:$0xf] %vm1447, %v1367
      %1497 = vst.msk [vmem:[#allocation8 + $0xc4] sm:$0xf] %vm1447, %v1368
      %1498 = vst.msk [vmem:[#allocation8 + $0xc8] sm:$0xf] %vm1447, %v1369
      %1499 = vst.msk [vmem:[#allocation8 + $0xcc] sm:$0xf] %vm1447, %v1370
      %1500 = vst.msk [vmem:[#allocation8 + $0xd0] sm:$0xf] %vm1447, %v1371
      %1501 = vst.msk [vmem:[#allocation8 + $0xd4] sm:$0xf] %vm1447, %v1372
      %1502 = vst.msk [vmem:[#allocation8 + $0xd8] sm:$0xf] %vm1447, %v1373
      %1503 = vst.msk [vmem:[#allocation8 + $0xdc] sm:$0xf] %vm1447, %v1374
      %1504 = vst.msk [vmem:[#allocation8 + $0xe0] sm:$0xf] %vm1447, %v1375
      %1505 = vst.msk [vmem:[#allocation8 + $0xe4] sm:$0xf] %vm1447, %v1376
      %1506 = vst.msk [vmem:[#allocation8 + $0xe8] sm:$0xf] %vm1447, %v1377
      %1507 = vst.msk [vmem:[#allocation8 + $0xec] sm:$0xf] %vm1447, %v1378
      %1508 = vst.msk [vmem:[#allocation8 + $0xf0] sm:$0xf] %vm1447, %v1379
      %1509 = vst.msk [vmem:[#allocation8 + $0xf4] sm:$0xf] %vm1447, %v1380
      %1510 = vst.msk [vmem:[#allocation8 + $0xf8] sm:$0xf] %vm1447, %v1381
      %1511 = vst.msk [vmem:[#allocation8 + $0xfc] sm:$0xf] %vm1447, %v1382
    $region25: #{_stem.2} parent=1 // pred_fallthru
      _
    // Predicated region
    $region26: #{_stem.2} parent=1 // pred_check
      _
    $region27: #{_stem.2} parent=1 // pred_check_branch
      %1513 = sbr.rel (0) target = $region29
    $region28: #{_stem.2} parent=1 // pred_region
      %s1515 = ssub.s32 4096, 4096
      %1516 = vsyncadd [#allocation5], %s1515
      %s1517 = sshll.u32 [#allocation8], 4
      %s1518 = int_to_ptr.vmem [resolvable:$true] %s1517
      %1523 = dma.vmem_to_hbm [thread:$0]  %s1518, 4096, %s2, [#allocation5], 64, 64, 4
    $region29: #{_stem.2} parent=1 // pred_fallthru
      _
    // Predicated region
    $region30: #{_stem.2} parent=1 // pred_check
      _
    $region31: #{_stem.2} parent=1 // pred_check_branch
      %1525 = sbr.rel (0) target = $region33
    $region32: #{_stem.2} parent=1 // pred_region
      %1526 = dma.done [#allocation5], 4096
    $region33: #{_stem.2} parent=1 // pred_fallthru
      _
    %1527 = vsyncpa [#allocation4], 1
    %1528 = vsyncpa [#allocation7], 1
    %1529 = vsyncpa [#allocation5], 1

// kernel: _stem.3
$region0: #{_stem.3}
  #allocation0 [shape = 'u32[]', space=smem, size = 0x4, offset = 0x4, fixed_abs, tag = 'smem constant byte address 0x4 - core index']
  #allocation1 [shape = 'u32[144,128]{1,0:T(1,128)}', space=vmem, size = 0x12000, scoped, tag = 'internal scratch']
  %s0 = inlined_call_operand.hbm [shape: bf16[2,128,128], index: 0, kind: input, shape index: {}]
  %s1 = inlined_call_operand.hbm [shape: f32[1,128], index: 1, kind: input, shape index: {}]
  %s2 = inlined_call_operand.hbm [shape: f32[1,128], index: 2, kind: input, shape index: {}]
  %s3 = inlined_call_operand.hbm [shape: f32[128,32], index: 3, kind: input, shape index: {}]
  %s4 = inlined_call_operand.hbm [shape: f32[32,128], index: 4, kind: input, shape index: {}]
  %s5 = inlined_call_operand.hbm [shape: bf16[2,128,128], index: 5, kind: output, shape index: {}]
  %s6 = sld [smem:[#allocation0]]
  $region73: #{_stem.3} parent=0
    _
  %s8 = ssub.s32 1, %s6
  %s9 = scalar_select 0, %s8, %s6
  $region1: #{_stem.3} parent=0
    #allocation2 [shape = 'u8[65536]{0}', space=vmem, size = 0x10000, scoped, tag = 'input window, operand 0']
    #allocation3 [shape = 's32[2]{0}', space=sflag, size = 0x8, scoped, tag = 'scoped memory for _stem.3']
    #allocation4 [shape = 's32[2]{0}', space=sflag, size = 0x8, scoped, tag = 'scoped memory for _stem.3']
    #allocation5 [shape = 'u8[512]{0}', space=vmem, size = 0x400, scoped, tag = 'input window, operand 1, single buffered']
    #allocation6 [shape = 's32[1]{0}', space=sflag, size = 0x4, scoped, tag = 'scoped memory for _stem.3']
    #allocation7 [shape = 'u8[512]{0}', space=vmem, size = 0x400, scoped, tag = 'input window, operand 2, single buffered']
    #allocation8 [shape = 'u8[65536]{0}', space=vmem, size = 0x10000, scoped, tag = 'input window, operand 3, single buffered']
    #allocation9 [shape = 's32[1]{0}', space=sflag, size = 0x4, scoped, tag = 'scoped memory for _stem.3']
    #allocation10 [shape = 'u8[16384]{0}', space=vmem, size = 0x4000, scoped, tag = 'input window, operand 4, single buffered']
    #allocation11 [shape = 'u8[65536]{0}', space=vmem, size = 0x10000, scoped, tag = 'output window, operand 0']
    %10 = vsyncpa [#allocation3], 0
    %s11 = scalar_lea.sflag [#allocation3], 1
    %12 = vsyncpa %s11, 0
    %13 = vsyncpa [#allocation6], 0
    %14 = vsyncpa [#allocation9], 0
    %15 = vsyncpa [#allocation4], 0
    %s16 = scalar_lea.sflag [#allocation4], 1
    %17 = vsyncpa %s16, 0
    loop: start=0, step=1, limit=4
    $region2: #{_stem.3} parent=1 // loop_pre_header
      _
    $region3: #{_stem.3} parent=1 // loop_header
      %s19 = sphi 0, %s23
      %p20 = scmp.ge.s32.totalorder %s19, 4
      %s29 = sphi 0, %s31
      %s32 = sphi 0, %s29
      %s33 = sphi 0, %s32
      %s49 = sphi 0, %s33
      %s53 = sphi 0, %s53
      %s55 = sphi 0, %s53
      %s56 = sphi 0, %s55
      %s70 = sphi 0, %s56
      %s74 = sphi 0, %s74
      %s76 = sphi 0, %s74
      %s77 = sphi 0, %s76
      %s91 = sphi 0, %s77
      %s95 = sphi 0, %s95
      %s97 = sphi 0, %s95
      %s98 = sphi 0, %s97
      %s112 = sphi 0, %s98
      %s116 = sphi 0, %s116
      %s118 = sphi 0, %s116
      %s119 = sphi 0, %s118
      %s133 = sphi 0, %s119
      %s139 = sphi 0, %s141
      %s142 = sphi 0, %s139
      %s143 = sphi 0, %s142
      %s159 = sphi 0, %s143
    $region4: #{_stem.3} parent=1 // loop_header_branch
      %22 = sbr.rel (%p20) target = $region8
    $region5: #{_stem.3} parent=1 // loop_body
      %s24 = ssub.s32 %s19, 1
      %s25 = ssub.s32 %s19, 2
      %s26 = sadd.s32 %s19, 1
      %s27 = ssub.s32 %s19, %s26
      %p28 = scmp.eq.s32.totalorder %s27, 0
      %s30 = sadd.s32 %s29, 1
      %s31 = scalar_select %p28, %s29, %s30
      %p34 = pneg %p28
      %p35 = scmp.eq.s32.totalorder %s19, 1
      %p36 = por %p34, %p35
      %p37 = scmp.ne.s32.totalorder %s29, %s32
      %p38 = scmp.eq.s32.totalorder %s19, 0
      %p39 = por %p37, %p38
      %p40 = scmp.ne.s32.totalorder %s29, %s32
      %p41 = scmp.eq.s32.totalorder %s24, 1
      %p42 = por %p40, %p41
      %p43 = scmp.ne.s32.totalorder %s32, %s33
      %p44 = scmp.eq.s32.totalorder %s24, 0
      %p45 = por %p43, %p44
      %p46 = scmp.ne.s32.totalorder %s32, %s33
      %p47 = scmp.eq.s32.totalorder %s25, 1
      %p48 = por %p46, %p47
      %p50 = scmp.ne.s32.totalorder %s33, %s49
      %p51 = scmp.eq.s32.totalorder %s25, 0
      %p52 = por %p50, %p51
      %s54 = sadd.s32 %s53, 1
      %p57 = scmp.eq.s32.totalorder %s19, 1
      %p58 = scmp.ne.s32.totalorder %s53, %s55
      %p59 = scmp.eq.s32.totalorder %s19, 0
      %p60 = por %p58, %p59
      %p61 = scmp.ne.s32.totalorder %s53, %s55
      %p62 = scmp.eq.s32.totalorder %s24, 1
      %p63 = por %p61, %p62
      %p64 = scmp.ne.s32.totalorder %s55, %s56
      %p65 = scmp.eq.s32.totalorder %s24, 0
      %p66 = por %p64, %p65
      %p67 = scmp.ne.s32.totalorder %s55, %s56
      %p68 = scmp.eq.s32.totalorder %s25, 1
      %p69 = por %p67, %p68
      %p71 = scmp.ne.s32.totalorder %s56, %s70
      %p72 = scmp.eq.s32.totalorder %s25, 0
      %p73 = por %p71, %p72
      %s75 = sadd.s32 %s74, 1
      %p78 = scmp.eq.s32.totalorder %s19, 1
      %p79 = scmp.ne.s32.totalorder %s74, %s76
      %p80 = scmp.eq.s32.totalorder %s19, 0
      %p81 = por %p79, %p80
      %p82 = scmp.ne.s32.totalorder %s74, %s76
      %p83 = scmp.eq.s32.totalorder %s24, 1
      %p84 = por %p82, %p83
      %p85 = scmp.ne.s32.totalorder %s76, %s77
      %p86 = scmp.eq.s32.totalorder %s24, 0
      %p87 = por %p85, %p86
      %p88 = scmp.ne.s32.totalorder %s76, %s77
      %p89 = scmp.eq.s32.totalorder %s25, 1
      %p90 = por %p88, %p89
      %p92 = scmp.ne.s32.totalorder %s77, %s91
      %p93 = scmp.eq.s32.totalorder %s25, 0
      %p94 = por %p92, %p93
      %s96 = sadd.s32 %s95, 1
      %p99 = scmp.eq.s32.totalorder %s19, 1
      %p100 = scmp.ne.s32.totalorder %s95, %s97
      %p101 = scmp.eq.s32.totalorder %s19, 0
      %p102 = por %p100, %p101
      %p103 = scmp.ne.s32.totalorder %s95, %s97
      %p104 = scmp.eq.s32.totalorder %s24, 1
      %p105 = por %p103, %p104
      %p106 = scmp.ne.s32.totalorder %s97, %s98
      %p107 = scmp.eq.s32.totalorder %s24, 0
      %p108 = por %p106, %p107
      %p109 = scmp.ne.s32.totalorder %s97, %s98
      %p110 = scmp.eq.s32.totalorder %s25, 1
      %p111 = por %p109, %p110
      %p113 = scmp.ne.s32.totalorder %s98, %s112
      %p114 = scmp.eq.s32.totalorder %s25, 0
      %p115 = por %p113, %p114
      %s117 = sadd.s32 %s116, 1
      %p120 = scmp.eq.s32.totalorder %s19, 1
      %p121 = scmp.ne.s32.totalorder %s116, %s118
      %p122 = scmp.eq.s32.totalorder %s19, 0
      %p123 = por %p121, %p122
      %p124 = scmp.ne.s32.totalorder %s116, %s118
      %p125 = scmp.eq.s32.totalorder %s24, 1
      %p126 = por %p124, %p125
      %p127 = scmp.ne.s32.totalorder %s118, %s119
      %p128 = scmp.eq.s32.totalorder %s24, 0
      %p129 = por %p127, %p128
      %p130 = scmp.ne.s32.totalorder %s118, %s119
      %p131 = scmp.eq.s32.totalorder %s25, 1
      %p132 = por %p130, %p131
      %p134 = scmp.ne.s32.totalorder %s119, %s133
      %p135 = scmp.eq.s32.totalorder %s25, 0
      %p136 = por %p134, %p135
      %s137 = ssub.s32 %s19, %s26
      %p138 = scmp.eq.s32.totalorder %s137, 0
      %s140 = sadd.s32 %s139, 1
      %s141 = scalar_select %p138, %s139, %s140
      %p144 = pneg %p138
      %p145 = scmp.eq.s32.totalorder %s19, 1
      %p146 = por %p144, %p145
      %p147 = scmp.ne.s32.totalorder %s139, %s142
      %p148 = scmp.eq.s32.totalorder %s19, 0
      %p149 = por %p147, %p148
      %p150 = scmp.ne.s32.totalorder %s139, %s142
      %p151 = scmp.eq.s32.totalorder %s24, 1
      %p152 = por %p150, %p151
      %p153 = scmp.ne.s32.totalorder %s142, %s143
      %p154 = scmp.eq.s32.totalorder %s24, 0
      %p155 = por %p153, %p154
      %p156 = scmp.ne.s32.totalorder %s142, %s143
      %p157 = scmp.eq.s32.totalorder %s25, 1
      %p158 = por %p156, %p157
      %p160 = scmp.ne.s32.totalorder %s143, %s159
      %p161 = scmp.eq.s32.totalorder %s25, 0
      %p162 = por %p160, %p161
      %p163 = scmp.le.s32.totalorder 1, %s19
      %p164 = scmp.lt.s32.totalorder %s19, 3
      %p165 = pnand %p163, %p164
      %p166 = pneg %p165
      // Predicated region
      $region9: #{_stem.3} parent=5 // pred_check
        _
      $region10: #{_stem.3} parent=5 // pred_check_branch
        %168 = sbr.rel (%p165) target = $region12
      $region11: #{_stem.3} parent=5 // pred_region
        %s169 = ssub.s32 %s19, 1
        // Predicated region
        $region13: #{_stem.3} parent=11 // pred_check
          %p170 = pneg %p66
        $region14: #{_stem.3} parent=11 // pred_check_branch
          %172 = sbr.rel (%p170) target = $region16
        $region15: #{_stem.3} parent=11 // pred_region
          %s174 = ssub.s32 16, 16
          %175 = vsyncadd [#allocation6], %s174
          %s177 = sshll.u32 [#allocation5], 4
          %s178 = int_to_ptr.vmem [resolvable:$true] %s177
          %180 = dma.hbm_to_vmem [thread:$0]  %s1, 16, %s178, [#allocation6]
        $region16: #{_stem.3} parent=11 // pred_fallthru
          _
        // Predicated region
        $region17: #{_stem.3} parent=11 // pred_check
          %p181 = pneg %p87
        $region18: #{_stem.3} parent=11 // pred_check_branch
          %183 = sbr.rel (%p181) target = $region20
        $region19: #{_stem.3} parent=11 // pred_region
          %s185 = ssub.s32 16, 16
          %186 = vsyncadd [#allocation6], %s185
          %s188 = sshll.u32 [#allocation7], 4
          %s189 = int_to_ptr.vmem [resolvable:$true] %s188
          %191 = dma.hbm_to_vmem [thread:$0]  %s2, 16, %s189, [#allocation6]
        $region20: #{_stem.3} parent=11 // pred_fallthru
          _
        // Predicated region
        $region21: #{_stem.3} parent=11 // pred_check
          %p192 = pneg %p108
        $region22: #{_stem.3} parent=11 // pred_check_branch
          %194 = sbr.rel (%p192) target = $region24
        $region23: #{_stem.3} parent=11 // pred_region
          %s196 = ssub.s32 2048, 2048
          %197 = vsyncadd [#allocation9], %s196
          %s198 = sshll.u32 [#allocation8], 4
          %s199 = int_to_ptr.vmem [resolvable:$true] %s198
          %204 = dma.hbm_to_vmem [thread:$0]  %s3, 2048, %s199, [#allocation9], 128, 128, 8
        $region24: #{_stem.3} parent=11 // pred_fallthru
          _
        // Predicated region
        $region25: #{_stem.3} parent=11 // pred_check
          %p205 = pneg %p129
        $region26: #{_stem.3} parent=11 // pred_check_branch
          %207 = sbr.rel (%p205) target = $region28
        $region27: #{_stem.3} parent=11 // pred_region
          %s209 = ssub.s32 512, 512
          %210 = vsyncadd [#allocation9], %s209
          %s211 = sshll.u32 [#allocation10], 4
          %s212 = int_to_ptr.vmem [resolvable:$true] %s211
          %217 = dma.hbm_to_vmem [thread:$0]  %s4, 512, %s212, [#allocation9], 128, 128, 8
        $region28: #{_stem.3} parent=11 // pred_fallthru
          _
      $region12: #{_stem.3} parent=5 // pred_fallthru
        _
      %p218 = scmp.lt.s32.totalorder %s19, 2
      // Predicated region
      $region29: #{_stem.3} parent=5 // pred_check
        %p219 = pneg %p218
      $region30: #{_stem.3} parent=5 // pred_check_branch
        %221 = sbr.rel (%p219) target = $region32
      $region31: #{_stem.3} parent=5 // pred_region
        // Predicated region
        $region33: #{_stem.3} parent=31 // pred_check
          %p222 = pneg %p39
        $region34: #{_stem.3} parent=31 // pred_check_branch
          %224 = sbr.rel (%p222) target = $region36
        $region35: #{_stem.3} parent=31 // pred_region
          %s225 = sand.u32 %s29, 1
          %s226 = scalar_lea.sflag [#allocation3], %s225
          %s227 = sand.u32 %s29, 1
          %s228 = smul.addr %s227, 64
          %s229 = scalar_lea.vmem [#allocation2], %s228
          %s231 = ssub.s32 1024, 1024
          %232 = vsyncadd %s226, %s231
          %s233 = smul.addr %s19, 16
          %s234 = smul.addr %s233, 64
          %s235 = scalar_lea.hbm %s0, %s234
          %s236 = sshll.u32 %s229, 4
          %s237 = int_to_ptr.vmem [resolvable:$true] %s236
          %242 = dma.hbm_to_vmem [thread:$0]  %s235, 1024, %s237, %s226, 64, 64, 4
        $region36: #{_stem.3} parent=31 // pred_fallthru
          _
      $region32: #{_stem.3} parent=5 // pred_fallthru
        _
      %p243 = scmp.le.s32.totalorder 1, %s19
      %p244 = scmp.lt.s32.totalorder %s19, 3
      %p245 = pnand %p243, %p244
      %p246 = pneg %p245
      // Predicated region
      $region37: #{_stem.3} parent=5 // pred_check
        _
      $region38: #{_stem.3} parent=5 // pred_check_branch
        %248 = sbr.rel (%p245) target = $region40
      $region39: #{_stem.3} parent=5 // pred_region
        %s249 = ssub.s32 %s19, 1
        %s250 = sand.u32 %s32, 1
        %s251 = scalar_lea.sflag [#allocation3], %s250
        %s252 = sand.u32 %s32, 1
        %s253 = smul.addr %s252, 64
        %s254 = scalar_lea.vmem [#allocation2], %s253
        // Predicated region
        $region41: #{_stem.3} parent=39 // pred_check
          %p255 = pneg %p45
        $region42: #{_stem.3} parent=39 // pred_check_branch
          %257 = sbr.rel (%p255) target = $region44
        $region43: #{_stem.3} parent=39 // pred_region
          %258 = dma.done %s251, 1024
        $region44: #{_stem.3} parent=39 // pred_fallthru
          _
        // Predicated region
        $region45: #{_stem.3} parent=39 // pred_check
          %p259 = pneg %p66
        $region46: #{_stem.3} parent=39 // pred_check_branch
          %261 = sbr.rel (%p259) target = $region48
        $region47: #{_stem.3} parent=39 // pred_region
          %262 = dma.done [#allocation6], 16
        $region48: #{_stem.3} parent=39 // pred_fallthru
          _
        // Predicated region
        $region49: #{_stem.3} parent=39 // pred_check
          %p263 = pneg %p87
        $region50: #{_stem.3} parent=39 // pred_check_branch
          %265 = sbr.rel (%p263) target = $region52
        $region51: #{_stem.3} parent=39 // pred_region
          %266 = dma.done [#allocation6], 16
        $region52: #{_stem.3} parent=39 // pred_fallthru
          _
        // Predicated region
        $region53: #{_stem.3} parent=39 // pred_check
          %p267 = pneg %p108
        $region54: #{_stem.3} parent=39 // pred_check_branch
          %269 = sbr.rel (%p267) target = $region56
        $region55: #{_stem.3} parent=39 // pred_region
          %270 = dma.done [#allocation9], 2048
        $region56: #{_stem.3} parent=39 // pred_fallthru
          _
        // Predicated region
        $region57: #{_stem.3} parent=39 // pred_check
          %p271 = pneg %p129
        $region58: #{_stem.3} parent=39 // pred_check_branch
          %273 = sbr.rel (%p271) target = $region60
        $region59: #{_stem.3} parent=39 // pred_region
          %274 = dma.done [#allocation9], 512
        $region60: #{_stem.3} parent=39 // pred_fallthru
          _
        %s275 = sand.u32 %s32, 1
        %s276 = scalar_lea.sflag [#allocation3], %s275
        %s277 = sand.u32 %s32, 1
        %s278 = smul.addr %s277, 64
        %s279 = scalar_lea.vmem [#allocation2], %s278
        %p280 = pneg %p45
        %p281 = pneg %p42
        %p282 = pneg %p66
        %p283 = pneg %p63
        %p284 = pneg %p87
        %p285 = pneg %p84
        %p286 = pneg %p108
        %p287 = pneg %p105
        %p288 = pneg %p129
        %p289 = pneg %p126
        %p290 = pneg %p155
        %p291 = pneg %p152
        %s292 = sand.u32 %s142, 1
        %s293 = scalar_lea.sflag [#allocation4], %s292
        %s294 = sand.u32 %s142, 1
        %s295 = smul.addr %s294, 64
        %s296 = scalar_lea.vmem [#allocation11], %s295
        %v297 = vld [vmem:[%s254] sm:$0xf]
        %v298 = vld [vmem:[%s254 + $0x4] sm:$0xf]
        %v299 = vld [vmem:[%s254 + $0x8] sm:$0xf]
        %v300 = vld [vmem:[%s254 + $0xc] sm:$0xf]
        %v301 = vld [vmem:[%s254 + $0x10] sm:$0xf]
        %v302 = vld [vmem:[%s254 + $0x14] sm:$0xf]
        %v303 = vld [vmem:[%s254 + $0x18] sm:$0xf]
        %v304 = vld [vmem:[%s254 + $0x1c] sm:$0xf]
        %v305 = vld [vmem:[%s254 + $0x20] sm:$0xf]
        %v306 = vld [vmem:[%s254 + $0x24] sm:$0xf]
        %v307 = vld [vmem:[%s254 + $0x28] sm:$0xf]
        %v308 = vld [vmem:[%s254 + $0x2c] sm:$0xf]
        %v309 = vld [vmem:[%s254 + $0x30] sm:$0xf]
        %v310 = vld [vmem:[%s254 + $0x34] sm:$0xf]
        %v311 = vld [vmem:[%s254 + $0x38] sm:$0xf]
        %v312 = vld [vmem:[%s254 + $0x3c] sm:$0xf]
        %v313 = vunpack.c.l.bf16 %v297
        %v314 = vunpack.c.l.bf16 %v298
        %v315 = vunpack.c.l.bf16 %v299
        %v316 = vunpack.c.l.bf16 %v300
        %v317 = vunpack.c.l.bf16 %v301
        %v318 = vunpack.c.l.bf16 %v302
        %v319 = vunpack.c.l.bf16 %v303
        %v320 = vunpack.c.l.bf16 %v304
        %v321 = vunpack.c.l.bf16 %v305
        %v322 = vunpack.c.l.bf16 %v306
        %v323 = vunpack.c.l.bf16 %v307
        %v324 = vunpack.c.l.bf16 %v308
        %v325 = vunpack.c.l.bf16 %v309
        %v326 = vunpack.c.l.bf16 %v310
        %v327 = vunpack.c.l.bf16 %v311
        %v328 = vunpack.c.l.bf16 %v312
        %v329 = vadd.f32 %v313, %v314
        %v330 = vadd.f32 %v329, %v315
        %v331 = vadd.f32 %v330, %v316
        %v332 = vadd.f32 %v331, %v317
        %v333 = vadd.f32 %v332, %v318
        %v334 = vadd.f32 %v333, %v319
        %v335 = vadd.f32 %v334, %v320
        %v336 = vadd.f32 %v335, %v321
        %v337 = vadd.f32 %v336, %v322
        %v338 = vadd.f32 %v337, %v323
        %v339 = vadd.f32 %v338, %v324
        %v340 = vadd.f32 %v339, %v325
        %v341 = vadd.f32 %v340, %v326
        %v342 = vadd.f32 %v341, %v327
        %v343 = vadd.f32 %v342, %v328
        %v344 = vrot.slane %v343, 4
        %v345 = vadd.f32 %v343, %v344
        %v346 = vrot.slane %v345, 2
        %v347 = vadd.f32 %v345, %v346
        %v348 = vrot.slane %v347, 1
        %v349 = vadd.f32 %v347, %v348
        %v350 = vld [vmem:[#allocation8] sm:$0xff]
        %v351 = vld [vmem:[#allocation8 + $0x8] sm:$0xff]
        %v352 = vld [vmem:[#allocation8 + $0x10] sm:$0xff]
        %v353 = vld [vmem:[#allocation8 + $0x18] sm:$0xff]
        %v354 = vld [vmem:[#allocation8 + $0x20] sm:$0xff]
        %v355 = vld [vmem:[#allocation8 + $0x28] sm:$0xff]
        %v356 = vld [vmem:[#allocation8 + $0x30] sm:$0xff]
        %v357 = vld [vmem:[#allocation8 + $0x38] sm:$0xff]
        %v358 = vld [vmem:[#allocation8 + $0x40] sm:$0xff]
        %v359 = vld [vmem:[#allocation8 + $0x48] sm:$0xff]
        %v360 = vld [vmem:[#allocation8 + $0x50] sm:$0xff]
        %v361 = vld [vmem:[#allocation8 + $0x58] sm:$0xff]
        %v362 = vld [vmem:[#allocation8 + $0x60] sm:$0xff]
        %v363 = vld [vmem:[#allocation8 + $0x68] sm:$0xff]
        %v364 = vld [vmem:[#allocation8 + $0x70] sm:$0xff]
        %v365 = vld [vmem:[#allocation8 + $0x78] sm:$0xff]
        %366 = vmatprep.subr.mxu0 0.0
        %367 = vmatpush1.msra.mxu0 %v350
        %368 = vmatprep.subr.mxu0 0.0
        %369 = vmatpush1.msra.mxu0 %v351
        %370 = vmatprep.subr.mxu0 0.0
        %371 = vmatpush1.msra.mxu0 %v352
        %372 = vmatprep.subr.mxu0 0.0
        %373 = vmatpush1.msra.mxu0 %v353
        %374 = vmatprep.subr.mxu0 0.0
        %375 = vmatpush1.msra.mxu0 %v354
        %376 = vmatprep.subr.mxu0 0.0
        %377 = vmatpush1.msra.mxu0 %v355
        %378 = vmatprep.subr.mxu0 0.0
        %379 = vmatpush1.msra.mxu0 %v356
        %380 = vmatprep.subr.mxu0 0.0
        %381 = vmatpush1.msra.mxu0 %v357
        %382 = vmatprep.subr.mxu0 0.0
        %383 = vmatpush1.msra.mxu0 %v358
        %384 = vmatprep.subr.mxu0 0.0
        %385 = vmatpush1.msra.mxu0 %v359
        %386 = vmatprep.subr.mxu0 0.0
        %387 = vmatpush1.msra.mxu0 %v360
        %388 = vmatprep.subr.mxu0 0.0
        %389 = vmatpush1.msra.mxu0 %v361
        %390 = vmatprep.subr.mxu0 0.0
        %391 = vmatpush1.msra.mxu0 %v362
        %392 = vmatprep.subr.mxu0 0.0
        %393 = vmatpush1.msra.mxu0 %v363
        %394 = vmatprep.subr.mxu0 0.0
        %395 = vmatpush1.msra.mxu0 %v364
        %396 = vmatprep.subr.mxu0 0.0
        %397 = vmatpush1.msra.mxu0 %v365
        %398 = vmatprep.subr.mxu0 0.0
        %399 = vmatpush1.msra.mxu0 0.0
        %400 = vmatprep.subr.mxu0 0.0
        %401 = vmatpush1.msra.mxu0 0.0
        %402 = vmatprep.subr.mxu0 0.0
        %403 = vmatpush1.msra.mxu0 0.0
        %404 = vmatprep.subr.mxu0 0.0
        %405 = vmatpush1.msra.mxu0 0.0
        %406 = vmatprep.subr.mxu0 0.0
        %407 = vmatpush1.msra.mxu0 0.0
        %408 = vmatprep.subr.mxu0 0.0
        %409 = vmatpush1.msra.mxu0 0.0
        %410 = vmatprep.subr.mxu0 0.0
        %411 = vmatpush1.msra.mxu0 0.0
        %412 = vmatprep.subr.mxu0 0.0
        %413 = vmatpush1.msra.mxu0 0.0
        %414 = vmatprep.subr.mxu0 0.0
        %415 = vmatpush1.msra.mxu0 0.0
        %416 = vmatprep.subr.mxu0 0.0
        %417 = vmatpush1.msra.mxu0 0.0
        %418 = vmatprep.subr.mxu0 0.0
        %419 = vmatpush1.msra.mxu0 0.0
        %420 = vmatprep.subr.mxu0 0.0
        %421 = vmatpush1.msra.mxu0 0.0
        %422 = vmatprep.subr.mxu0 0.0
        %423 = vmatpush1.msra.mxu0 0.0
        %424 = vmatprep.subr.mxu0 0.0
        %425 = vmatpush1.msra.mxu0 0.0
        %426 = vmatprep.subr.mxu0 0.0
        %427 = vmatpush1.msra.mxu0 0.0
        %428 = vmatprep.subr.mxu0 0.0
        %429 = vmatpush1.msra.mxu0 0.0
        %430 = vmatprep.mubr.f32.mxu0 0.0
        %431 = vmatmul.mubr.f32.gmra.mrb[0].mxu0 %v349
        %v432 = vpop.f32.mrb[0].mxu0
        %v433 = vadd.f32 0.0, %v432
        %v434 = vpop.f32.mrb[0].mxu0
        %435 = vdwg.mxu0
        %v436 = vmul.f32 %v433, 0.001953125
        %v437 = vld [vmem:[#allocation10] sm:$0xff]
        %v438 = vld [vmem:[#allocation10 + $0x8] sm:$0xff]
        %v439 = vld [vmem:[#allocation10 + $0x10] sm:$0xff]
        %v440 = vld [vmem:[#allocation10 + $0x18] sm:$0xff]
        %vm441 = vcmask 261120
        %v443 = vsel %vm441, %v436, 0
        %445 = vmatprep.subr.mxu0 0.0
        %446 = vmatpush1.msra.mxu0 %v437
        %447 = vmatprep.subr.mxu0 0.0
        %448 = vmatpush1.msra.mxu0 %v438
        %449 = vmatprep.subr.mxu0 0.0
        %450 = vmatpush1.msra.mxu0 %v439
        %451 = vmatprep.subr.mxu0 0.0
        %452 = vmatpush1.msra.mxu0 %v440
        %453 = vmatprep.subr.mxu0 0.0
        %454 = vmatpush1.msra.mxu0 0.0
        %455 = vmatprep.subr.mxu0 0.0
        %456 = vmatpush1.msra.mxu0 0.0
        %457 = vmatprep.subr.mxu0 0.0
        %458 = vmatpush1.msra.mxu0 0.0
        %459 = vmatprep.subr.mxu0 0.0
        %460 = vmatpush1.msra.mxu0 0.0
        %461 = vmatprep.subr.mxu0 0.0
        %462 = vmatpush1.msra.mxu0 0.0
        %463 = vmatprep.subr.mxu0 0.0
        %464 = vmatpush1.msra.mxu0 0.0
        %465 = vmatprep.subr.mxu0 0.0
        %466 = vmatpush1.msra.mxu0 0.0
        %467 = vmatprep.subr.mxu0 0.0
        %468 = vmatpush1.msra.mxu0 0.0
        %469 = vmatprep.subr.mxu0 0.0
        %470 = vmatpush1.msra.mxu0 0.0
        %471 = vmatprep.subr.mxu0 0.0
        %472 = vmatpush1.msra.mxu0 0.0
        %473 = vmatprep.subr.mxu0 0.0
        %474 = vmatpush1.msra.mxu0 0.0
        %475 = vmatprep.subr.mxu0 0.0
        %476 = vmatpush1.msra.mxu0 0.0
        %477 = vmatprep.subr.mxu0 0.0
        %478 = vmatpush1.msra.mxu0 0.0
        %479 = vmatprep.subr.mxu0 0.0
        %480 = vmatpush1.msra.mxu0 0.0
        %481 = vmatprep.subr.mxu0 0.0
        %482 = vmatpush1.msra.mxu0 0.0
        %483 = vmatprep.subr.mxu0 0.0
        %484 = vmatpush1.msra.mxu0 0.0
        %485 = vmatprep.subr.mxu0 0.0
        %486 = vmatpush1.msra.mxu0 0.0
        %487 = vmatprep.subr.mxu0 0.0
        %488 = vmatpush1.msra.mxu0 0.0
        %489 = vmatprep.subr.mxu0 0.0
        %490 = vmatpush1.msra.mxu0 0.0
        %491 = vmatprep.subr.mxu0 0.0
        %492 = vmatpush1.msra.mxu0 0.0
        %493 = vmatprep.subr.mxu0 0.0
        %494 = vmatpush1.msra.mxu0 0.0
        %495 = vmatprep.subr.mxu0 0.0
        %496 = vmatpush1.msra.mxu0 0.0
        %497 = vmatprep.subr.mxu0 0.0
        %498 = vmatpush1.msra.mxu0 0.0
        %499 = vmatprep.subr.mxu0 0.0
        %500 = vmatpush1.msra.mxu0 0.0
        %501 = vmatprep.subr.mxu0 0.0
        %502 = vmatpush1.msra.mxu0 0.0
        %503 = vmatprep.subr.mxu0 0.0
        %504 = vmatpush1.msra.mxu0 0.0
        %505 = vmatprep.subr.mxu0 0.0
        %506 = vmatpush1.msra.mxu0 0.0
        %507 = vmatprep.subr.mxu0 0.0
        %508 = vmatpush1.msra.mxu0 0.0
        %509 = vmatprep.mubr.f32.mxu0 0.0
        %510 = vmatmul.mubr.f32.gmra.mrb[0].mxu0 %v443
        %v511 = vpop.f32.mrb[0].mxu0
        %v512 = vadd.f32 0.0, %v511
        %v513 = vpop.f32.mrb[0].mxu0
        %514 = vdwg.mxu0
        %v515 = vlaneseq
        %v516 = vshrl.u32 %v515, 7
        %v517 = vsub.s32 0, %v516
        %v518 = vrot.slane %v512, %v517
        %v519 = vsub.f32 %v313, %v518
        %v520 = vsub.f32 %v314, %v518
        %v521 = vsub.f32 %v315, %v518
        %v522 = vsub.f32 %v316, %v518
        %v523 = vsub.f32 %v317, %v518
        %v524 = vsub.f32 %v318, %v518
        %v525 = vsub.f32 %v319, %v518
        %v526 = vsub.f32 %v320, %v518
        %v527 = vsub.f32 %v321, %v518
        %v528 = vsub.f32 %v322, %v518
        %v529 = vsub.f32 %v323, %v518
        %v530 = vsub.f32 %v324, %v518
        %v531 = vsub.f32 %v325, %v518
        %v532 = vsub.f32 %v326, %v518
        %v533 = vsub.f32 %v327, %v518
        %v534 = vsub.f32 %v328, %v518
        %v535 = vmul.f32 %v519, %v519
        %v536 = vmul.f32 %v520, %v520
        %v537 = vmul.f32 %v521, %v521
        %v538 = vmul.f32 %v522, %v522
        %v539 = vmul.f32 %v523, %v523
        %v540 = vmul.f32 %v524, %v524
        %v541 = vmul.f32 %v525, %v525
        %v542 = vmul.f32 %v526, %v526
        %v543 = vmul.f32 %v527, %v527
        %v544 = vmul.f32 %v528, %v528
        %v545 = vmul.f32 %v529, %v529
        %v546 = vmul.f32 %v530, %v530
        %v547 = vmul.f32 %v531, %v531
        %v548 = vmul.f32 %v532, %v532
        %v549 = vmul.f32 %v533, %v533
        %v550 = vmul.f32 %v534, %v534
        %v551 = vadd.f32 %v535, %v536
        %v552 = vadd.f32 %v551, %v537
        %v553 = vadd.f32 %v552, %v538
        %v554 = vadd.f32 %v553, %v539
        %v555 = vadd.f32 %v554, %v540
        %v556 = vadd.f32 %v555, %v541
        %v557 = vadd.f32 %v556, %v542
        %v558 = vadd.f32 %v557, %v543
        %v559 = vadd.f32 %v558, %v544
        %v560 = vadd.f32 %v559, %v545
        %v561 = vadd.f32 %v560, %v546
        %v562 = vadd.f32 %v561, %v547
        %v563 = vadd.f32 %v562, %v548
        %v564 = vadd.f32 %v563, %v549
        %v565 = vadd.f32 %v564, %v550
        %v566 = vrot.slane %v565, 4
        %v567 = vadd.f32 %v565, %v566
        %v568 = vrot.slane %v567, 2
        %v569 = vadd.f32 %v567, %v568
        %v570 = vrot.slane %v569, 1
        %v571 = vadd.f32 %v569, %v570
        %572 = vmatprep.subr.mxu0 0.0
        %573 = vmatpush1.msra.mxu0 %v350
        %574 = vmatprep.subr.mxu0 0.0
        %575 = vmatpush1.msra.mxu0 %v351
        %576 = vmatprep.subr.mxu0 0.0
        %577 = vmatpush1.msra.mxu0 %v352
        %578 = vmatprep.subr.mxu0 0.0
        %579 = vmatpush1.msra.mxu0 %v353
        %580 = vmatprep.subr.mxu0 0.0
        %581 = vmatpush1.msra.mxu0 %v354
        %582 = vmatprep.subr.mxu0 0.0
        %583 = vmatpush1.msra.mxu0 %v355
        %584 = vmatprep.subr.mxu0 0.0
        %585 = vmatpush1.msra.mxu0 %v356
        %586 = vmatprep.subr.mxu0 0.0
        %587 = vmatpush1.msra.mxu0 %v357
        %588 = vmatprep.subr.mxu0 0.0
        %589 = vmatpush1.msra.mxu0 %v358
        %590 = vmatprep.subr.mxu0 0.0
        %591 = vmatpush1.msra.mxu0 %v359
        %592 = vmatprep.subr.mxu0 0.0
        %593 = vmatpush1.msra.mxu0 %v360
        %594 = vmatprep.subr.mxu0 0.0
        %595 = vmatpush1.msra.mxu0 %v361
        %596 = vmatprep.subr.mxu0 0.0
        %597 = vmatpush1.msra.mxu0 %v362
        %598 = vmatprep.subr.mxu0 0.0
        %599 = vmatpush1.msra.mxu0 %v363
        %600 = vmatprep.subr.mxu0 0.0
        %601 = vmatpush1.msra.mxu0 %v364
        %602 = vmatprep.subr.mxu0 0.0
        %603 = vmatpush1.msra.mxu0 %v365
        %604 = vmatprep.subr.mxu0 0.0
        %605 = vmatpush1.msra.mxu0 0.0
        %606 = vmatprep.subr.mxu0 0.0
        %607 = vmatpush1.msra.mxu0 0.0
        %608 = vmatprep.subr.mxu0 0.0
        %609 = vmatpush1.msra.mxu0 0.0
        %610 = vmatprep.subr.mxu0 0.0
        %611 = vmatpush1.msra.mxu0 0.0
        %612 = vmatprep.subr.mxu0 0.0
        %613 = vmatpush1.msra.mxu0 0.0
        %614 = vmatprep.subr.mxu0 0.0
        %615 = vmatpush1.msra.mxu0 0.0
        %616 = vmatprep.subr.mxu0 0.0
        %617 = vmatpush1.msra.mxu0 0.0
        %618 = vmatprep.subr.mxu0 0.0
        %619 = vmatpush1.msra.mxu0 0.0
        %620 = vmatprep.subr.mxu0 0.0
        %621 = vmatpush1.msra.mxu0 0.0
        %622 = vmatprep.subr.mxu0 0.0
        %623 = vmatpush1.msra.mxu0 0.0
        %624 = vmatprep.subr.mxu0 0.0
        %625 = vmatpush1.msra.mxu0 0.0
        %626 = vmatprep.subr.mxu0 0.0
        %627 = vmatpush1.msra.mxu0 0.0
        %628 = vmatprep.subr.mxu0 0.0
        %629 = vmatpush1.msra.mxu0 0.0
        %630 = vmatprep.subr.mxu0 0.0
        %631 = vmatpush1.msra.mxu0 0.0
        %632 = vmatprep.subr.mxu0 0.0
        %633 = vmatpush1.msra.mxu0 0.0
        %634 = vmatprep.subr.mxu0 0.0
        %635 = vmatpush1.msra.mxu0 0.0
        %636 = vmatprep.mubr.f32.mxu0 0.0
        %637 = vmatmul.mubr.f32.gmra.mrb[0].mxu0 %v571
        %v638 = vpop.f32.mrb[0].mxu0
        %v639 = vadd.f32 0.0, %v638
        %v640 = vpop.f32.mrb[0].mxu0
        %641 = vdwg.mxu0
        %v642 = vmul.f32 %v639, 0.001953125
        %v644 = vsel %vm441, %v642, 0
        %646 = vmatprep.subr.mxu0 0.0
        %647 = vmatpush1.msra.mxu0 %v437
        %648 = vmatprep.subr.mxu0 0.0
        %649 = vmatpush1.msra.mxu0 %v438
        %650 = vmatprep.subr.mxu0 0.0
        %651 = vmatpush1.msra.mxu0 %v439
        %652 = vmatprep.subr.mxu0 0.0
        %653 = vmatpush1.msra.mxu0 %v440
        %654 = vmatprep.subr.mxu0 0.0
        %655 = vmatpush1.msra.mxu0 0.0
        %656 = vmatprep.subr.mxu0 0.0
        %657 = vmatpush1.msra.mxu0 0.0
        %658 = vmatprep.subr.mxu0 0.0
        %659 = vmatpush1.msra.mxu0 0.0
        %660 = vmatprep.subr.mxu0 0.0
        %661 = vmatpush1.msra.mxu0 0.0
        %662 = vmatprep.subr.mxu0 0.0
        %663 = vmatpush1.msra.mxu0 0.0
        %664 = vmatprep.subr.mxu0 0.0
        %665 = vmatpush1.msra.mxu0 0.0
        %666 = vmatprep.subr.mxu0 0.0
        %667 = vmatpush1.msra.mxu0 0.0
        %668 = vmatprep.subr.mxu0 0.0
        %669 = vmatpush1.msra.mxu0 0.0
        %670 = vmatprep.subr.mxu0 0.0
        %671 = vmatpush1.msra.mxu0 0.0
        %672 = vmatprep.subr.mxu0 0.0
        %673 = vmatpush1.msra.mxu0 0.0
        %674 = vmatprep.subr.mxu0 0.0
        %675 = vmatpush1.msra.mxu0 0.0
        %676 = vmatprep.subr.mxu0 0.0
        %677 = vmatpush1.msra.mxu0 0.0
        %678 = vmatprep.subr.mxu0 0.0
        %679 = vmatpush1.msra.mxu0 0.0
        %680 = vmatprep.subr.mxu0 0.0
        %681 = vmatpush1.msra.mxu0 0.0
        %682 = vmatprep.subr.mxu0 0.0
        %683 = vmatpush1.msra.mxu0 0.0
        %684 = vmatprep.subr.mxu0 0.0
        %685 = vmatpush1.msra.mxu0 0.0
        %686 = vmatprep.subr.mxu0 0.0
        %687 = vmatpush1.msra.mxu0 0.0
        %688 = vmatprep.subr.mxu0 0.0
        %689 = vmatpush1.msra.mxu0 0.0
        %690 = vmatprep.subr.mxu0 0.0
        %691 = vmatpush1.msra.mxu0 0.0
        %692 = vmatprep.subr.mxu0 0.0
        %693 = vmatpush1.msra.mxu0 0.0
        %694 = vmatprep.subr.mxu0 0.0
        %695 = vmatpush1.msra.mxu0 0.0
        %696 = vmatprep.subr.mxu0 0.0
        %697 = vmatpush1.msra.mxu0 0.0
        %698 = vmatprep.subr.mxu0 0.0
        %699 = vmatpush1.msra.mxu0 0.0
        %700 = vmatprep.subr.mxu0 0.0
        %701 = vmatpush1.msra.mxu0 0.0
        %702 = vmatprep.subr.mxu0 0.0
        %703 = vmatpush1.msra.mxu0 0.0
        %704 = vmatprep.subr.mxu0 0.0
        %705 = vmatpush1.msra.mxu0 0.0
        %706 = vmatprep.subr.mxu0 0.0
        %707 = vmatpush1.msra.mxu0 0.0
        %708 = vmatprep.subr.mxu0 0.0
        %709 = vmatpush1.msra.mxu0 0.0
        %710 = vmatprep.mubr.f32.mxu0 0.0
        %711 = vmatmul.mubr.f32.gmra.mrb[0].mxu0 %v644
        %v712 = vpop.f32.mrb[0].mxu0
        %v713 = vadd.f32 1e-05, %v712
        %v714 = vpop.f32.mrb[0].mxu0
        %715 = vdwg.mxu0
        %v716 = vrsqrt.pop %v713
        %v717 = vlaneseq
        %v718 = vshrl.u32 %v717, 7
        %v719 = vsub.s32 0, %v718
        %v720 = vrot.slane %v716, %v719
        %v721 = vmul.f32 %v519, %v720
        %v722 = vmul.f32 %v520, %v720
        %v723 = vmul.f32 %v521, %v720
        %v724 = vmul.f32 %v522, %v720
        %v725 = vmul.f32 %v523, %v720
        %v726 = vmul.f32 %v524, %v720
        %v727 = vmul.f32 %v525, %v720
        %v728 = vmul.f32 %v526, %v720
        %v729 = vmul.f32 %v527, %v720
        %v730 = vmul.f32 %v528, %v720
        %v731 = vmul.f32 %v529, %v720
        %v732 = vmul.f32 %v530, %v720
        %v733 = vmul.f32 %v531, %v720
        %v734 = vmul.f32 %v532, %v720
        %v735 = vmul.f32 %v533, %v720
        %v736 = vmul.f32 %v534, %v720
        %v737 = vld [vmem:[#allocation5] sm:$0x1]
        %v739 = vlaneseq
        %v740 = vshrl.u32 %v739, 7
        %v741 = vsub.s32 0, %v740
        %v742 = vrot.slane %v737, %v741
        %v744 = vmul.f32 %v721, %v742
        %v745 = vmul.f32 %v722, %v742
        %v746 = vmul.f32 %v723, %v742
        %v747 = vmul.f32 %v724, %v742
        %v748 = vmul.f32 %v725, %v742
        %v749 = vmul.f32 %v726, %v742
        %v750 = vmul.f32 %v727, %v742
        %v751 = vmul.f32 %v728, %v742
        %v752 = vmul.f32 %v729, %v742
        %v753 = vmul.f32 %v730, %v742
        %v754 = vmul.f32 %v731, %v742
        %v755 = vmul.f32 %v732, %v742
        %v756 = vmul.f32 %v733, %v742
        %v757 = vmul.f32 %v734, %v742
        %v758 = vmul.f32 %v735, %v742
        %v759 = vmul.f32 %v736, %v742
        %v760 = vld [vmem:[#allocation7] sm:$0x1]
        %v762 = vlaneseq
        %v763 = vshrl.u32 %v762, 7
        %v764 = vsub.s32 0, %v763
        %v765 = vrot.slane %v760, %v764
        %v767 = vadd.f32 %v744, %v765
        %v768 = vadd.f32 %v745, %v765
        %v769 = vadd.f32 %v746, %v765
        %v770 = vadd.f32 %v747, %v765
        %v771 = vadd.f32 %v748, %v765
        %v772 = vadd.f32 %v749, %v765
        %v773 = vadd.f32 %v750, %v765
        %v774 = vadd.f32 %v751, %v765
        %v775 = vadd.f32 %v752, %v765
        %v776 = vadd.f32 %v753, %v765
        %v777 = vadd.f32 %v754, %v765
        %v778 = vadd.f32 %v755, %v765
        %v779 = vadd.f32 %v756, %v765
        %v780 = vadd.f32 %v757, %v765
        %v781 = vadd.f32 %v758, %v765
        %v782 = vadd.f32 %v759, %v765
        %v783 = vmax.f32 %v767, 0.0
        %v784 = vmax.f32 %v768, 0.0
        %v785 = vmax.f32 %v769, 0.0
        %v786 = vmax.f32 %v770, 0.0
        %v787 = vmax.f32 %v771, 0.0
        %v788 = vmax.f32 %v772, 0.0
        %v789 = vmax.f32 %v773, 0.0
        %v790 = vmax.f32 %v774, 0.0
        %v791 = vmax.f32 %v775, 0.0
        %v792 = vmax.f32 %v776, 0.0
        %v793 = vmax.f32 %v777, 0.0
        %v794 = vmax.f32 %v778, 0.0
        %v795 = vmax.f32 %v779, 0.0
        %v796 = vmax.f32 %v780, 0.0
        %v797 = vmax.f32 %v781, 0.0
        %v798 = vmax.f32 %v782, 0.0
        %v799 = vpack.c.bf16 %v784, %v783
        %v800 = vpack.c.bf16 %v786, %v785
        %v801 = vpack.c.bf16 %v788, %v787
        %v802 = vpack.c.bf16 %v790, %v789
        %v803 = vpack.c.bf16 %v792, %v791
        %v804 = vpack.c.bf16 %v794, %v793
        %v805 = vpack.c.bf16 %v796, %v795
        %v806 = vpack.c.bf16 %v798, %v797
        %v815 = vunpack.c.l.b16 %v799
        %v816 = vunpack.c.h.b16 %v799
        %v817 = vunpack.c.l.b16 %v800
        %v818 = vunpack.c.h.b16 %v800
        %v819 = vunpack.c.l.b16 %v801
        %v820 = vunpack.c.h.b16 %v801
        %v821 = vunpack.c.l.b16 %v802
        %v822 = vunpack.c.h.b16 %v802
        %v823 = vunpack.c.l.b16 %v803
        %v824 = vunpack.c.h.b16 %v803
        %v825 = vunpack.c.l.b16 %v804
        %v826 = vunpack.c.h.b16 %v804
        %v827 = vunpack.c.l.b16 %v805
        %v828 = vunpack.c.h.b16 %v805
        %v829 = vunpack.c.l.b16 %v806
        %v830 = vunpack.c.h.b16 %v806
        %v831 = vpack.c.b16 %v815, %v815
        %v832 = vpack.c.b16 %v816, %v816
        %v833 = vpack.c.b16 %v817, %v817
        %v834 = vpack.c.b16 %v818, %v818
        %v835 = vpack.c.b16 %v819, %v819
        %v836 = vpack.c.b16 %v820, %v820
        %v837 = vpack.c.b16 %v821, %v821
        %v838 = vpack.c.b16 %v822, %v822
        %v839 = vpack.c.b16 %v823, %v823
        %v840 = vpack.c.b16 %v824, %v824
        %v841 = vpack.c.b16 %v825, %v825
        %v842 = vpack.c.b16 %v826, %v826
        %v843 = vpack.c.b16 %v827, %v827
        %v844 = vpack.c.b16 %v828, %v828
        %v845 = vpack.c.b16 %v829, %v829
        %v846 = vpack.c.b16 %v830, %v830
        %863 = vst [vmem:[%s296] sm:$0xf] %v831
        %864 = vst [vmem:[%s296 + $0x4] sm:$0xf] %v832
        %865 = vst [vmem:[%s296 + $0x8] sm:$0xf] %v833
        %866 = vst [vmem:[%s296 + $0xc] sm:$0xf] %v834
        %867 = vst [vmem:[%s296 + $0x10] sm:$0xf] %v835
        %868 = vst [vmem:[%s296 + $0x14] sm:$0xf] %v836
        %869 = vst [vmem:[%s296 + $0x18] sm:$0xf] %v837
        %870 = vst [vmem:[%s296 + $0x1c] sm:$0xf] %v838
        %871 = vst [vmem:[%s296 + $0x20] sm:$0xf] %v839
        %872 = vst [vmem:[%s296 + $0x24] sm:$0xf] %v840
        %873 = vst [vmem:[%s296 + $0x28] sm:$0xf] %v841
        %874 = vst [vmem:[%s296 + $0x2c] sm:$0xf] %v842
        %875 = vst [vmem:[%s296 + $0x30] sm:$0xf] %v843
        %876 = vst [vmem:[%s296 + $0x34] sm:$0xf] %v844
        %877 = vst [vmem:[%s296 + $0x38] sm:$0xf] %v845
        %878 = vst [vmem:[%s296 + $0x3c] sm:$0xf] %v846
        %s879 = sand.u32 %s142, 1
        %s880 = scalar_lea.sflag [#allocation4], %s879
        %s881 = sand.u32 %s142, 1
        %s882 = smul.addr %s881, 64
        %s883 = scalar_lea.vmem [#allocation11], %s882
        // Predicated region
        $region61: #{_stem.3} parent=39 // pred_check
          %p884 = pneg %p152
        $region62: #{_stem.3} parent=39 // pred_check_branch
          %886 = sbr.rel (%p884) target = $region64
        $region63: #{_stem.3} parent=39 // pred_region
          %s888 = ssub.s32 1024, 1024
          %889 = vsyncadd %s880, %s888
          %s890 = smul.addr %s24, 16
          %s891 = smul.addr %s890, 64
          %s892 = scalar_lea.hbm %s5, %s891
          %s893 = sshll.u32 %s883, 4
          %s894 = int_to_ptr.vmem [resolvable:$true] %s893
          %899 = dma.vmem_to_hbm [thread:$0]  %s894, 1024, %s892, %s880, 64, 64, 4
        $region64: #{_stem.3} parent=39 // pred_fallthru
          _
      $region40: #{_stem.3} parent=5 // pred_fallthru
        _
      %p900 = scmp.le.s32.totalorder 2, %s19
      // Predicated region
      $region65: #{_stem.3} parent=5 // pred_check
        %p901 = pneg %p900
      $region66: #{_stem.3} parent=5 // pred_check_branch
        %903 = sbr.rel (%p901) target = $region68
      $region67: #{_stem.3} parent=5 // pred_region
        %s904 = ssub.s32 %s19, 2
        // Predicated region
        $region69: #{_stem.3} parent=67 // pred_check
          %p905 = pneg %p158
        $region70: #{_stem.3} parent=67 // pred_check_branch
          %907 = sbr.rel (%p905) target = $region72
        $region71: #{_stem.3} parent=67 // pred_region
          %s908 = sand.u32 %s143, 1
          %s909 = scalar_lea.sflag [#allocation4], %s908
          %s910 = sand.u32 %s143, 1
          %s911 = smul.addr %s910, 64
          %s912 = scalar_lea.vmem [#allocation11], %s911
          %913 = dma.done %s909, 1024
        $region72: #{_stem.3} parent=67 // pred_fallthru
          _
      $region68: #{_stem.3} parent=5 // pred_fallthru
        _
    $region6: #{_stem.3} parent=1 // loop_footer
      %s23 = sadd.s32 1, %s19
    $region7: #{_stem.3} parent=1 // loop_footer_branch
      %18 = sbr.rel target = $region3
    $region8: #{_stem.3} parent=1 // loop_exit
      _
    %914 = vsyncpa [#allocation3], 1
    %s915 = scalar_lea.sflag [#allocation3], 1
    %916 = vsyncpa %s915, 1
    %917 = vsyncpa [#allocation6], 1
    %918 = vsyncpa [#allocation9], 1
    %919 = vsyncpa [#allocation4], 1
    %s920 = scalar_lea.sflag [#allocation4], 1
    %921 = vsyncpa %s920, 1

</llo_original>
